<compile_context>
chip_gen: v5e
topology: v5e:2x2
jax: 0.10.0
libtpu: 0.0.40
codegen_flags: <defaults>
</compile_context>

<pallas_src>
import numpy as np
import jax
import jax.numpy as jnp
from jax.experimental import pallas as pl
from jax.experimental.pallas import tpu as pltpu

NEG_SLOPE = 0.01            # torch.nn.LeakyReLU default
LANE = 128                  # feature dims padded to one lane width
FUSE_MAX_N = 2048           # bf16 A <= 8 MiB -> keep A resident in VMEM (v7x-safe)
STREAM_TILE = 512           # A streaming tile for the large-graph fallback
VMEM_LIMIT = 48 * 1024 * 1024


def _round_up(x, m):
    return ((x + m - 1) // m) * m


def _pad2(x, rows, cols, dtype):
    out = jnp.zeros((rows, cols), dtype)
    return out.at[: x.shape[0], : x.shape[1]].set(x.astype(dtype))


# ---------------------------------------------------------------------------
# Fused kernel: conv1+act, conv2+act, conv3, mean-pool, linear — A resident in
# VMEM, single kernel instance (no grid).  Used whenever A fits.
# ---------------------------------------------------------------------------
def _fused_gcn_kernel(a_ref, x_ref, m_ref, p_ref, inv_ref,
                      wr_ref, ws_ref, b_ref, wl_ref, bl_ref, o_ref):
    a = a_ref[...]                        # (n_pad, n_pad) bf16, read once
    mask = m_ref[...]                     # (n_pad, 1) f32, 1.0 for real rows
    h = x_ref[...]                        # (n_pad, LANE) bf16
    for l in range(3):                    # unrolled; static weight indexing
        agg = jnp.dot(a, h, preferred_element_type=jnp.float32)
        out = (jnp.dot(agg.astype(jnp.bfloat16), wr_ref[l],
                       preferred_element_type=jnp.float32)
               + jnp.dot(h, ws_ref[l], preferred_element_type=jnp.float32)
               + b_ref[l])
        if l < 2:                         # LeakyReLU after conv1/conv2 only
            out = jnp.where(out > 0, out, NEG_SLOPE * out)
        h = (out * mask).astype(jnp.bfloat16)
    # global_mean_pool: P is an unnormalized 0/1 one-hot (bf16, exact); the
    # 1/count normalization stays in f32 after the matmul.
    pooled = jnp.dot(p_ref[...], h, preferred_element_type=jnp.float32)
    pooled = pooled * inv_ref[...]
    o_ref[...] = (jnp.dot(pooled, wl_ref[...],
                          preferred_element_type=jnp.float32) + bl_ref[...])


def _fused_forward(adj, x_p, mask, pool, inv_cnt, wr, ws, bs, wl, bl,
                   *, n_pad, g_pad):
    flops = (3 * (2 * n_pad * n_pad * LANE + 4 * n_pad * LANE * LANE)
             + 2 * g_pad * n_pad * LANE + 2 * g_pad * LANE * LANE)
    bytes_accessed = (n_pad * n_pad * 2 + 2 * n_pad * LANE * 2
                      + g_pad * n_pad * 2 + 8 * LANE * LANE * 2
                      + g_pad * LANE * 4)
    return pl.pallas_call(
        _fused_gcn_kernel,
        out_shape=jax.ShapeDtypeStruct((g_pad, LANE), jnp.float32),
        compiler_params=pltpu.CompilerParams(vmem_limit_bytes=VMEM_LIMIT),
        cost_estimate=pl.CostEstimate(flops=flops, transcendentals=0,
                                      bytes_accessed=bytes_accessed),
    )(adj, x_p, mask, pool, inv_cnt, wr, ws, bs, wl, bl)


# ---------------------------------------------------------------------------
# Streamed fallback, kernel 1/2: one GraphConv + LeakyReLU, A streamed in
# (tile, tile) bf16 blocks (tile = 512 for large graphs), f32 VMEM accumulator.
# ---------------------------------------------------------------------------
def _conv_kernel(a_ref, hc_ref, hr_ref, wr_ref, ws_ref, b_ref, m_ref,
                 o_ref, acc_ref):
    k = pl.program_id(1)

    @pl.when(k == 0)
    def _():
        acc_ref[...] = jnp.zeros_like(acc_ref)

    # bf16 x bf16 -> f32 accumulate on the MXU (dominant FLOPs, streamed A).
    acc_ref[...] += jnp.dot(a_ref[...], hc_ref[...],
                            preferred_element_type=jnp.float32)

    @pl.when(k == pl.num_programs(1) - 1)
    def _():
        # Two bf16 dots (no f32 concat, no f32 MXU path).
        out = (jnp.dot(acc_ref[...].astype(jnp.bfloat16), wr_ref[...],
                       preferred_element_type=jnp.float32)
               + jnp.dot(hr_ref[...], ws_ref[...],
                         preferred_element_type=jnp.float32)
               + b_ref[...])
        out = jnp.where(out > 0, out, NEG_SLOPE * out) * m_ref[...]
        o_ref[...] = out.astype(o_ref.dtype)


def _conv_layer(adj, h, w_rel_t, w_root_t, b, mask, *, n_pad, tile):
    grid = (n_pad // tile, n_pad // tile)
    flops = 2 * n_pad * n_pad * LANE + 4 * n_pad * LANE * LANE
    bytes_accessed = (n_pad * n_pad * 2 + 3 * n_pad * LANE * 2
                      + 2 * LANE * LANE * 2 + LANE * 4 + n_pad * 4)
    return pl.pallas_call(
        _conv_kernel,
        out_shape=jax.ShapeDtypeStruct((n_pad, LANE), jnp.bfloat16),
        grid_spec=pltpu.PrefetchScalarGridSpec(
            num_scalar_prefetch=0,
            grid=grid,
            in_specs=[
                pl.BlockSpec((tile, tile), lambda i, k: (i, k)),    # A tile
                pl.BlockSpec((tile, LANE), lambda i, k: (k, 0)),    # h (neighbors)
                pl.BlockSpec((tile, LANE), lambda i, k: (i, 0)),    # h (root rows)
                pl.BlockSpec((LANE, LANE), lambda i, k: (0, 0)),    # W_rel^T  bf16
                pl.BlockSpec((LANE, LANE), lambda i, k: (0, 0)),    # W_root^T bf16
                pl.BlockSpec((1, LANE), lambda i, k: (0, 0)),       # bias f32
                pl.BlockSpec((tile, 1), lambda i, k: (i, 0)),       # row mask f32
            ],
            out_specs=pl.BlockSpec((tile, LANE), lambda i, k: (i, 0)),
            scratch_shapes=[pltpu.VMEM((tile, LANE), jnp.float32)]),
        compiler_params=pltpu.CompilerParams(
            # TODO(synk): on v7x, switch axis 0 to pltpu.CORE_PARALLEL if the
            # trace shows only one TensorCore in use.
            dimension_semantics=("parallel", "arbitrary"),
            vmem_limit_bytes=VMEM_LIMIT),
        cost_estimate=pl.CostEstimate(flops=flops, transcendentals=0,
                                      bytes_accessed=bytes_accessed),
    )(adj, h, h, w_rel_t, w_root_t, b, mask)


# ---------------------------------------------------------------------------
# Streamed fallback, kernel 3: mean-pool folded through conv3 + final Linear.
#   pooled = ((P@A@h2)@W3_rel^T + (P@h2)@W3_root^T) * (1/count) + b3
#   out    = pooled @ W_lin^T + b_lin
# grid = (col tiles j, row tiles i); i is the inner reduction building (P@A)[:, j].
# ---------------------------------------------------------------------------
def _pool_conv3_lin_kernel(p_i_ref, a_ref, p_j_ref, h_ref, wr_ref, ws_ref,
                           b_ref, inv_ref, wl_ref, bl_ref, o_ref,
                           pa_ref, agg_ref, root_ref):
    j = pl.program_id(0)
    i = pl.program_id(1)
    nj = pl.num_programs(0)
    ni = pl.num_programs(1)

    @pl.when(jnp.logical_and(j == 0, i == 0))
    def _():
        agg_ref[...] = jnp.zeros_like(agg_ref)
        root_ref[...] = jnp.zeros_like(root_ref)

    @pl.when(i == 0)
    def _():
        pa_ref[...] = jnp.zeros_like(pa_ref)

    # (P @ A)[:, col tile j] accumulated over A row tiles i  — bf16 x bf16.
    pa_ref[...] += jnp.dot(p_i_ref[...], a_ref[...],
                           preferred_element_type=jnp.float32)

    @pl.when(i == ni - 1)
    def _():
        h = h_ref[...]
        agg_ref[...] += jnp.dot(pa_ref[...].astype(jnp.bfloat16), h,
                                preferred_element_type=jnp.float32)
        root_ref[...] += jnp.dot(p_j_ref[...], h,
                                 preferred_element_type=jnp.float32)

    @pl.when(jnp.logical_and(j == nj - 1, i == ni - 1))
    def _():
        pooled = (jnp.dot(agg_ref[...].astype(jnp.bfloat16), wr_ref[...],
                          preferred_element_type=jnp.float32)
                  + jnp.dot(root_ref[...].astype(jnp.bfloat16), ws_ref[...],
                            preferred_element_type=jnp.float32))
        pooled = pooled * inv_ref[...] + b_ref[...]     # f32 normalization
        o_ref[...] = (jnp.dot(pooled, wl_ref[...],
                              preferred_element_type=jnp.float32) + bl_ref[...])


def _pool_conv3_lin(pool, adj, h2, w3_rel_t, w3_root_t, b3, inv_cnt, wl, bl,
                    *, n_pad, g_pad, tile):
    grid = (n_pad // tile, n_pad // tile)
    flops = (2 * g_pad * n_pad * n_pad + 4 * g_pad * n_pad * LANE
             + 6 * g_pad * LANE * LANE)
    bytes_accessed = (n_pad * n_pad * 2 + 2 * g_pad * n_pad * 2
                      + n_pad * LANE * 2 + 3 * LANE * LANE * 4)
    return pl.pallas_call(
        _pool_conv3_lin_kernel,
        out_shape=jax.ShapeDtypeStruct((g_pad, LANE), jnp.float32),
        grid_spec=pltpu.PrefetchScalarGridSpec(
            num_scalar_prefetch=0,
            grid=grid,
            in_specs=[
                pl.BlockSpec((g_pad, tile), lambda j, i: (0, i)),   # P (PA contraction)
                pl.BlockSpec((tile, tile), lambda j, i: (i, j)),    # A tile
                pl.BlockSpec((g_pad, tile), lambda j, i: (0, j)),   # P (root path)
                pl.BlockSpec((tile, LANE), lambda j, i: (j, 0)),    # h2 rows
                pl.BlockSpec((LANE, LANE), lambda j, i: (0, 0)),    # W3_rel^T  bf16
                pl.BlockSpec((LANE, LANE), lambda j, i: (0, 0)),    # W3_root^T bf16
                pl.BlockSpec((1, LANE), lambda j, i: (0, 0)),       # b3 f32
                pl.BlockSpec((g_pad, 1), lambda j, i: (0, 0)),      # 1/count f32
                pl.BlockSpec((LANE, LANE), lambda j, i: (0, 0)),    # W_lin^T f32
                pl.BlockSpec((1, LANE), lambda j, i: (0, 0)),       # b_lin f32
            ],
            out_specs=pl.BlockSpec((g_pad, LANE), lambda j, i: (0, 0)),
            scratch_shapes=[pltpu.VMEM((g_pad, tile), jnp.float32),
                            pltpu.VMEM((g_pad, LANE), jnp.float32),
                            pltpu.VMEM((g_pad, LANE), jnp.float32)]),
        compiler_params=pltpu.CompilerParams(
            dimension_semantics=("arbitrary", "arbitrary"),
            vmem_limit_bytes=VMEM_LIMIT),
        cost_estimate=pl.CostEstimate(flops=flops, transcendentals=0,
                                      bytes_accessed=bytes_accessed),
    )(pool, adj, pool, h2, w3_rel_t, w3_root_t, b3, inv_cnt, wl, bl)


# ---------------------------------------------------------------------------
# Host-side glue
# ---------------------------------------------------------------------------
def gcn_forward(params, x, edge_index, batch, num_graphs, *,
                force_streamed=False):
    N = x.shape[0]
    num_classes = params["w_lin"].shape[0]
    g_pad = max(8, _round_up(num_graphs, 8))

    use_fused = (not force_streamed) and N <= FUSE_MAX_N
    if use_fused:
        n_pad = _round_up(max(N, 128), 128)
        tile = None
    else:
        n128 = _round_up(max(N, 128), 128)
        tile = min(STREAM_TILE, n128)
        n_pad = _round_up(n128, tile)

    src, dst = edge_index[0], edge_index[1]
    # Dense A built DIRECTLY in bf16 (exact for edge multiplicities <= 256).
    # TODO(synk): for genuinely sparse graphs, replace the dense A with an
    # edge-list / segment-sum aggregation driven by scalar prefetch.
    adj = (jnp.zeros((n_pad, n_pad), jnp.bfloat16)
           .at[dst, src].add(jnp.ones(dst.shape, jnp.bfloat16)))

    # Unnormalized 0/1 one-hot pool matrix in bf16 (exact); 1/count stays f32.
    gids = jnp.arange(g_pad, dtype=batch.dtype)
    onehot = (batch[None, :] == gids[:, None])                      # (g_pad, N)
    counts = jnp.sum(onehot, axis=1, keepdims=True).astype(jnp.float32)
    inv_cnt = 1.0 / jnp.maximum(counts, 1.0)                        # (g_pad, 1)
    pool = _pad2(onehot, g_pad, n_pad, jnp.bfloat16)

    x_p = _pad2(x, n_pad, LANE, jnp.bfloat16)
    mask = jnp.zeros((n_pad, 1), jnp.float32).at[:N, :].set(1.0)    # real rows

    def w_t(w, dtype):          # (out, in) -> padded (LANE, LANE) W^T
        return _pad2(w.T, LANE, LANE, dtype)

    def b_row(b):
        return _pad2(b[None, :], 1, LANE, jnp.float32)

    wl = w_t(params["w_lin"], jnp.float32)
    bl = b_row(params["b_lin"])

    if use_fused:
        wr = jnp.stack([w_t(params["w1_rel"], jnp.bfloat16),
                        w_t(params["w2_rel"], jnp.bfloat16),
                        w_t(params["w3_rel"], jnp.bfloat16)])       # (3, 128, 128)
        ws = jnp.stack([w_t(params["w1_root"], jnp.bfloat16),
                        w_t(params["w2_root"], jnp.bfloat16),
                        w_t(params["w3_root"], jnp.bfloat16)])
        bs = jnp.stack([b_row(params["b1"]),
                        b_row(params["b2"]),
                        b_row(params["b3"])])                        # (3, 1, 128)
        out = _fused_forward(adj, x_p, mask, pool, inv_cnt, wr, ws, bs, wl, bl,
                             n_pad=n_pad, g_pad=g_pad)
    else:
        h1 = _conv_layer(adj, x_p, w_t(params["w1_rel"], jnp.bfloat16),
                         w_t(params["w1_root"], jnp.bfloat16),
                         b_row(params["b1"]), mask, n_pad=n_pad, tile=tile)
        h2 = _conv_layer(adj, h1, w_t(params["w2_rel"], jnp.bfloat16),
                         w_t(params["w2_root"], jnp.bfloat16),
                         b_row(params["b2"]), mask, n_pad=n_pad, tile=tile)
        out = _pool_conv3_lin(pool, adj, h2,
                              w_t(params["w3_rel"], jnp.bfloat16),
                              w_t(params["w3_root"], jnp.bfloat16),
                              b_row(params["b3"]), inv_cnt, wl, bl,
                              n_pad=n_pad, g_pad=g_pad, tile=tile)
    return out[:num_graphs, :num_classes]


def gcn_reference(params, x, edge_index, batch, num_graphs):
    """Pure-JAX f32 reference mirroring torch_geometric semantics."""
    N = x.shape[0]
    src, dst = edge_index[0], edge_index[1]
    adj = jnp.zeros((N, N), jnp.float32).at[dst, src].add(1.0)

    def conv(h, wr, b, ws):
        return (adj @ h) @ wr.T + b + h @ ws.T

    def lrelu(h):
        return jnp.where(h > 0, h, NEG_SLOPE * h)

    h = lrelu(conv(x, params["w1_rel"], params["b1"], params["w1_root"]))
    h = lrelu(conv(h, params["w2_rel"], params["b2"], params["w2_root"]))
    h = conv(h, params["w3_rel"], params["b3"], params["w3_root"])

    gids = jnp.arange(num_graphs)
    onehot = (batch[None, :] == gids[:, None]).astype(jnp.float32)
    pooled = (onehot @ h) / jnp.maximum(onehot.sum(1, keepdims=True), 1.0)
    return pooled @ params["w_lin"].T + params["b_lin"]


def init_params(key, in_feat=7, h_feat=8, num_classes=3):
    ks = jax.random.split(key, 11)

    def uni(k, shape, fan_in):
        bound = 1.0 / np.sqrt(fan_in)
        return jax.random.uniform(k, shape, jnp.float32, -bound, bound)

    return {
        "w1_rel":  uni(ks[0], (h_feat, in_feat), in_feat),
        "b1":      uni(ks[1], (h_feat,), in_feat),
        "w1_root": uni(ks[2], (h_feat, in_feat), in_feat),
        "w2_rel":  uni(ks[3], (h_feat, h_feat), h_feat),
        "b2":      uni(ks[4], (h_feat,), h_feat),
        "w2_root": uni(ks[5], (h_feat, h_feat), h_feat),
        "w3_rel":  uni(ks[6], (h_feat, h_feat), h_feat),
        "b3":      uni(ks[7], (h_feat,), h_feat),
        "w3_root": uni(ks[8], (h_feat, h_feat), h_feat),
        "w_lin":   uni(ks[9], (num_classes, h_feat), h_feat),
        "b_lin":   uni(ks[10], (num_classes,), h_feat),
    }


if __name__ == "__main__":
    in_feat, h_feat, num_classes = 7, 8, 3
    nodes_per_graph, num_graphs = 50, 3            # N = 150 -> fused path (n_pad=256)
    N = nodes_per_graph * num_graphs

    key = jax.random.PRNGKey(0)
    k_x, k_p = jax.random.split(key)

    x = jax.random.normal(k_x, (N, in_feat), jnp.float32)

    # Deterministic graph: a bidirectional ring inside each graph.
    edges = []
    for g in range(num_graphs):
        off = g * nodes_per_graph
        for i in range(nodes_per_graph):
            j = (i + 1) % nodes_per_graph
            edges.append((off + i, off + j))
            edges.append((off + j, off + i))
    edge_index = jnp.array(edges, dtype=jnp.int32).T        # (2, E) row0=src row1=dst
    batch = jnp.repeat(jnp.arange(num_graphs, dtype=jnp.int32), nodes_per_graph)

    params = init_params(k_p, in_feat, h_feat, num_classes)
    ref = gcn_reference(params, x, edge_index, batch, num_graphs)

    # Fused (A-resident) path — the default for this graph size.
    out_fused = gcn_forward(params, x, edge_index, batch, num_graphs)
    out_fused = jax.block_until_ready(out_fused)
    np.testing.assert_allclose(np.asarray(out_fused), np.asarray(ref),
                               rtol=3e-2, atol=3e-2)

    # Streamed-tile fallback path (used for large graphs); exercised here too.
    out_stream = gcn_forward(params, x, edge_index, batch, num_graphs,
                             force_streamed=True)
    out_stream = jax.block_until_ready(out_stream)
    np.testing.assert_allclose(np.asarray(out_stream), np.asarray(ref),
                               rtol=3e-2, atol=3e-2)

    print("KERNEL_OK")
</pallas_src>

<mosaic_0001>
module attributes {stable_mosaic.version = 11 : i64} {
  func.func @_fused_gcn_kernel(%arg0: memref<256x256xbf16, #tpu.memory_space<vmem>>, %arg1: memref<256x128xbf16, #tpu.memory_space<vmem>>, %arg2: memref<256x1xf32, #tpu.memory_space<vmem>>, %arg3: memref<8x256xbf16, #tpu.memory_space<vmem>>, %arg4: memref<8x1xf32, #tpu.memory_space<vmem>>, %arg5: memref<3x128x128xbf16, #tpu.memory_space<vmem>>, %arg6: memref<3x128x128xbf16, #tpu.memory_space<vmem>>, %arg7: memref<3x1x128xf32, #tpu.memory_space<vmem>>, %arg8: memref<128x128xf32, #tpu.memory_space<vmem>>, %arg9: memref<1x128xf32, #tpu.memory_space<vmem>>, %arg10: memref<8x128xf32, #tpu.memory_space<vmem>>) attributes {dimension_semantics = [], scalar_prefetch = 0 : i64, scratch_operands = 0 : i64, tpu.core_type = #tpu.core_type<tc>} {
    %c0 = arith.constant 0 : index
    %c0_0 = arith.constant 0 : index
    %0 = vector.load %arg0[%c0, %c0_0] : memref<256x256xbf16, #tpu.memory_space<vmem>>, vector<256x256xbf16>
    %c0_1 = arith.constant 0 : index
    %c0_2 = arith.constant 0 : index
    %1 = vector.load %arg2[%c0_1, %c0_2] : memref<256x1xf32, #tpu.memory_space<vmem>>, vector<256x1xf32>
    %c0_3 = arith.constant 0 : index
    %c0_4 = arith.constant 0 : index
    %2 = vector.load %arg1[%c0_3, %c0_4] : memref<256x128xbf16, #tpu.memory_space<vmem>>, vector<256x128xbf16>
    %cst = arith.constant dense<0.000000e+00> : vector<256x128xf32>
    %3 = tpu.matmul %0, %2, %cst {dimension_numbers = #tpu.dot_dimension_numbers<[1], [0], [0], [1], [0, 0, 1, 1], [], []>} : vector<256x256xbf16>, vector<256x128xbf16>, vector<256x128xf32> -> vector<256x128xf32>
    %4 = arith.truncf %3 : vector<256x128xf32> to vector<256x128xbf16>
    %c0_5 = arith.constant 0 : index
    %c0_6 = arith.constant 0 : index
    %c0_7 = arith.constant 0 : index
    %5 = vector.load %arg5[%c0_5, %c0_6, %c0_7] : memref<3x128x128xbf16, #tpu.memory_space<vmem>>, vector<1x128x128xbf16>
    %6 = vector.shape_cast %5 : vector<1x128x128xbf16> to vector<128x128xbf16>
    %cst_8 = arith.constant dense<0.000000e+00> : vector<256x128xf32>
    %7 = tpu.matmul %4, %6, %cst_8 {dimension_numbers = #tpu.dot_dimension_numbers<[1], [0], [0], [1], [0, 0, 1, 1], [], []>} : vector<256x128xbf16>, vector<128x128xbf16>, vector<256x128xf32> -> vector<256x128xf32>
    %c0_9 = arith.constant 0 : index
    %c0_10 = arith.constant 0 : index
    %c0_11 = arith.constant 0 : index
    %8 = vector.load %arg6[%c0_9, %c0_10, %c0_11] : memref<3x128x128xbf16, #tpu.memory_space<vmem>>, vector<1x128x128xbf16>
    %9 = vector.shape_cast %8 : vector<1x128x128xbf16> to vector<128x128xbf16>
    %cst_12 = arith.constant dense<0.000000e+00> : vector<256x128xf32>
    %10 = tpu.matmul %2, %9, %cst_12 {dimension_numbers = #tpu.dot_dimension_numbers<[1], [0], [0], [1], [0, 0, 1, 1], [], []>} : vector<256x128xbf16>, vector<128x128xbf16>, vector<256x128xf32> -> vector<256x128xf32>
    %11 = arith.addf %7, %10 : vector<256x128xf32>
    %c0_13 = arith.constant 0 : index
    %c0_14 = arith.constant 0 : index
    %c0_15 = arith.constant 0 : index
    %12 = vector.load %arg7[%c0_13, %c0_14, %c0_15] : memref<3x1x128xf32, #tpu.memory_space<vmem>>, vector<1x1x128xf32>
    %13 = vector.shape_cast %12 : vector<1x1x128xf32> to vector<1x128xf32>
    %14 = vector.broadcast %13 : vector<1x128xf32> to vector<256x128xf32>
    %15 = arith.addf %11, %14 : vector<256x128xf32>
    %cst_16 = arith.constant 0.000000e+00 : f32
    %16 = vector.broadcast %cst_16 : f32 to vector<256x128xf32>
    %17 = arith.cmpf ogt, %15, %16 : vector<256x128xf32>
    %cst_17 = arith.constant 0.00999999977 : f32
    %18 = vector.broadcast %cst_17 : f32 to vector<256x128xf32>
    %19 = arith.mulf %18, %15 : vector<256x128xf32>
    %20 = arith.select %17, %15, %19 : vector<256x128xi1>, vector<256x128xf32>
    %21 = vector.broadcast %1 : vector<256x1xf32> to vector<256x128xf32>
    %22 = arith.mulf %20, %21 : vector<256x128xf32>
    %23 = arith.truncf %22 : vector<256x128xf32> to vector<256x128xbf16>
    %cst_18 = arith.constant dense<0.000000e+00> : vector<256x128xf32>
    %24 = tpu.matmul %0, %23, %cst_18 {dimension_numbers = #tpu.dot_dimension_numbers<[1], [0], [0], [1], [0, 0, 1, 1], [], []>} : vector<256x256xbf16>, vector<256x128xbf16>, vector<256x128xf32> -> vector<256x128xf32>
    %25 = arith.truncf %24 : vector<256x128xf32> to vector<256x128xbf16>
    %c1 = arith.constant 1 : index
    %c0_19 = arith.constant 0 : index
    %c0_20 = arith.constant 0 : index
    %26 = vector.load %arg5[%c1, %c0_19, %c0_20] : memref<3x128x128xbf16, #tpu.memory_space<vmem>>, vector<1x128x128xbf16>
    %27 = vector.shape_cast %26 : vector<1x128x128xbf16> to vector<128x128xbf16>
    %cst_21 = arith.constant dense<0.000000e+00> : vector<256x128xf32>
    %28 = tpu.matmul %25, %27, %cst_21 {dimension_numbers = #tpu.dot_dimension_numbers<[1], [0], [0], [1], [0, 0, 1, 1], [], []>} : vector<256x128xbf16>, vector<128x128xbf16>, vector<256x128xf32> -> vector<256x128xf32>
    %c1_22 = arith.constant 1 : index
    %c0_23 = arith.constant 0 : index
    %c0_24 = arith.constant 0 : index
    %29 = vector.load %arg6[%c1_22, %c0_23, %c0_24] : memref<3x128x128xbf16, #tpu.memory_space<vmem>>, vector<1x128x128xbf16>
    %30 = vector.shape_cast %29 : vector<1x128x128xbf16> to vector<128x128xbf16>
    %cst_25 = arith.constant dense<0.000000e+00> : vector<256x128xf32>
    %31 = tpu.matmul %23, %30, %cst_25 {dimension_numbers = #tpu.dot_dimension_numbers<[1], [0], [0], [1], [0, 0, 1, 1], [], []>} : vector<256x128xbf16>, vector<128x128xbf16>, vector<256x128xf32> -> vector<256x128xf32>
    %32 = arith.addf %28, %31 : vector<256x128xf32>
    %c1_26 = arith.constant 1 : index
    %c0_27 = arith.constant 0 : index
    %c0_28 = arith.constant 0 : index
    %33 = vector.load %arg7[%c1_26, %c0_27, %c0_28] : memref<3x1x128xf32, #tpu.memory_space<vmem>>, vector<1x1x128xf32>
    %34 = vector.shape_cast %33 : vector<1x1x128xf32> to vector<1x128xf32>
    %35 = vector.broadcast %34 : vector<1x128xf32> to vector<256x128xf32>
    %36 = arith.addf %32, %35 : vector<256x128xf32>
    %cst_29 = arith.constant 0.000000e+00 : f32
    %37 = vector.broadcast %cst_29 : f32 to vector<256x128xf32>
    %38 = arith.cmpf ogt, %36, %37 : vector<256x128xf32>
    %cst_30 = arith.constant 0.00999999977 : f32
    %39 = vector.broadcast %cst_30 : f32 to vector<256x128xf32>
    %40 = arith.mulf %39, %36 : vector<256x128xf32>
    %41 = arith.select %38, %36, %40 : vector<256x128xi1>, vector<256x128xf32>
    %42 = vector.broadcast %1 : vector<256x1xf32> to vector<256x128xf32>
    %43 = arith.mulf %41, %42 : vector<256x128xf32>
    %44 = arith.truncf %43 : vector<256x128xf32> to vector<256x128xbf16>
    %cst_31 = arith.constant dense<0.000000e+00> : vector<256x128xf32>
    %45 = tpu.matmul %0, %44, %cst_31 {dimension_numbers = #tpu.dot_dimension_numbers<[1], [0], [0], [1], [0, 0, 1, 1], [], []>} : vector<256x256xbf16>, vector<256x128xbf16>, vector<256x128xf32> -> vector<256x128xf32>
    %46 = arith.truncf %45 : vector<256x128xf32> to vector<256x128xbf16>
    %c2 = arith.constant 2 : index
    %c0_32 = arith.constant 0 : index
    %c0_33 = arith.constant 0 : index
    %47 = vector.load %arg5[%c2, %c0_32, %c0_33] : memref<3x128x128xbf16, #tpu.memory_space<vmem>>, vector<1x128x128xbf16>
    %48 = vector.shape_cast %47 : vector<1x128x128xbf16> to vector<128x128xbf16>
    %cst_34 = arith.constant dense<0.000000e+00> : vector<256x128xf32>
    %49 = tpu.matmul %46, %48, %cst_34 {dimension_numbers = #tpu.dot_dimension_numbers<[1], [0], [0], [1], [0, 0, 1, 1], [], []>} : vector<256x128xbf16>, vector<128x128xbf16>, vector<256x128xf32> -> vector<256x128xf32>
    %c2_35 = arith.constant 2 : index
    %c0_36 = arith.constant 0 : index
    %c0_37 = arith.constant 0 : index
    %50 = vector.load %arg6[%c2_35, %c0_36, %c0_37] : memref<3x128x128xbf16, #tpu.memory_space<vmem>>, vector<1x128x128xbf16>
    %51 = vector.shape_cast %50 : vector<1x128x128xbf16> to vector<128x128xbf16>
    %cst_38 = arith.constant dense<0.000000e+00> : vector<256x128xf32>
    %52 = tpu.matmul %44, %51, %cst_38 {dimension_numbers = #tpu.dot_dimension_numbers<[1], [0], [0], [1], [0, 0, 1, 1], [], []>} : vector<256x128xbf16>, vector<128x128xbf16>, vector<256x128xf32> -> vector<256x128xf32>
    %53 = arith.addf %49, %52 : vector<256x128xf32>
    %c2_39 = arith.constant 2 : index
    %c0_40 = arith.constant 0 : index
    %c0_41 = arith.constant 0 : index
    %54 = vector.load %arg7[%c2_39, %c0_40, %c0_41] : memref<3x1x128xf32, #tpu.memory_space<vmem>>, vector<1x1x128xf32>
    %55 = vector.shape_cast %54 : vector<1x1x128xf32> to vector<1x128xf32>
    %56 = vector.broadcast %55 : vector<1x128xf32> to vector<256x128xf32>
    %57 = arith.addf %53, %56 : vector<256x128xf32>
    %58 = vector.broadcast %1 : vector<256x1xf32> to vector<256x128xf32>
    %59 = arith.mulf %57, %58 : vector<256x128xf32>
    %60 = arith.truncf %59 : vector<256x128xf32> to vector<256x128xbf16>
    %c0_42 = arith.constant 0 : index
    %c0_43 = arith.constant 0 : index
    %61 = vector.load %arg3[%c0_42, %c0_43] : memref<8x256xbf16, #tpu.memory_space<vmem>>, vector<8x256xbf16>
    %cst_44 = arith.constant dense<0.000000e+00> : vector<8x128xf32>
    %62 = tpu.matmul %61, %60, %cst_44 {dimension_numbers = #tpu.dot_dimension_numbers<[1], [0], [0], [1], [0, 0, 1, 1], [], []>} : vector<8x256xbf16>, vector<256x128xbf16>, vector<8x128xf32> -> vector<8x128xf32>
    %c0_45 = arith.constant 0 : index
    %c0_46 = arith.constant 0 : index
    %63 = vector.load %arg4[%c0_45, %c0_46] : memref<8x1xf32, #tpu.memory_space<vmem>>, vector<8x1xf32>
    %64 = vector.broadcast %63 : vector<8x1xf32> to vector<8x128xf32>
    %65 = arith.mulf %62, %64 : vector<8x128xf32>
    %c0_47 = arith.constant 0 : index
    %c0_48 = arith.constant 0 : index
    %66 = vector.load %arg8[%c0_47, %c0_48] : memref<128x128xf32, #tpu.memory_space<vmem>>, vector<128x128xf32>
    %cst_49 = arith.constant dense<0.000000e+00> : vector<8x128xf32>
    %67 = tpu.matmul %65, %66, %cst_49 {dimension_numbers = #tpu.dot_dimension_numbers<[1], [0], [0], [1], [0, 0, 1, 1], [], []>} : vector<8x128xf32>, vector<128x128xf32>, vector<8x128xf32> -> vector<8x128xf32>
    %c0_50 = arith.constant 0 : index
    %c0_51 = arith.constant 0 : index
    %68 = vector.load %arg9[%c0_50, %c0_51] : memref<1x128xf32, #tpu.memory_space<vmem>>, vector<1x128xf32>
    %69 = vector.broadcast %68 : vector<1x128xf32> to vector<8x128xf32>
    %70 = arith.addf %67, %69 : vector<8x128xf32>
    %c0_52 = arith.constant 0 : index
    %c0_53 = arith.constant 0 : index
    %71 = vector.load %arg10[%c0_52, %c0_53] : memref<8x128xf32, #tpu.memory_space<vmem>>, vector<8x128xf32>
    tpu.vector_store %arg10[%c0_52, %c0_53], %70 {strides = array<i32>} : memref<8x128xf32, #tpu.memory_space<vmem>>, vector<8x128xf32>,
    return
  }
}

</mosaic_0001>

<llo_original>
// kernel: tpu_custom_call.1
$region0: #{tpu_custom_call.1}
  #allocation0 [shape = 'u32[]', space=smem, size = 0x4, offset = 0x4, fixed_abs, tag = 'smem constant byte address 0x4 - core index']
  #allocation1 [shape = 'u32[72,128]{1,0:T(1,128)}', space=vmem, size = 0x9000, scoped, tag = 'internal scratch']
  %s0 = inlined_call_operand.vmem [shape: bf16[256,256], index: 0, kind: input, shape index: {}]
  %s1 = inlined_call_operand.hbm [shape: bf16[256,128], index: 1, kind: input, shape index: {}]
  %s2 = inlined_call_operand.vmem [shape: f32[256,1], index: 2, kind: input, shape index: {}]
  %s3 = inlined_call_operand.vmem [shape: bf16[8,256], index: 3, kind: input, shape index: {}]
  %s4 = inlined_call_operand.vmem [shape: f32[8,1], index: 4, kind: input, shape index: {}]
  %s5 = inlined_call_operand.hbm [shape: bf16[3,128,128], index: 5, kind: input, shape index: {}]
  %s6 = inlined_call_operand.hbm [shape: bf16[3,128,128], index: 6, kind: input, shape index: {}]
  %s7 = inlined_call_operand.vmem [shape: f32[3,1,128], index: 7, kind: input, shape index: {}]
  %s8 = inlined_call_operand.hbm [shape: f32[128,128], index: 8, kind: input, shape index: {}]
  %s9 = inlined_call_operand.vmem [shape: f32[1,128], index: 9, kind: input, shape index: {}]
  %s10 = inlined_call_operand.hbm [shape: f32[8,128], index: 10, kind: output, shape index: {}]
  %s11 = sld [smem:[#allocation0]]
  $region66: #{tpu_custom_call.1} parent=0
    _
  %s13 = ssub.s32 1, %s11
  %s14 = scalar_select 0, %s13, %s11
  $region1: #{tpu_custom_call.1} parent=0
    #allocation2 [shape = 'u8[65536]{0}', space=vmem, size = 0x10000, scoped, tag = 'input window, operand 1, single buffered']
    #allocation3 [shape = 's32[1]{0}', space=sflag, size = 0x4, scoped, tag = 'scoped memory for tpu_custom_call.1']
    #allocation4 [shape = 's32[1]{0}', space=sflag, size = 0x4, scoped, tag = 'scoped memory for tpu_custom_call.1']
    #allocation5 [shape = 'u8[98304]{0}', space=vmem, size = 0x18000, scoped, tag = 'input window, operand 5, single buffered']
    #allocation6 [shape = 's32[1]{0}', space=sflag, size = 0x4, scoped, tag = 'scoped memory for tpu_custom_call.1']
    #allocation7 [shape = 'u8[98304]{0}', space=vmem, size = 0x18000, scoped, tag = 'input window, operand 6, single buffered']
    #allocation8 [shape = 'u8[65536]{0}', space=vmem, size = 0x10000, scoped, tag = 'input window, operand 8, single buffered']
    #allocation9 [shape = 's32[1]{0}', space=sflag, size = 0x4, scoped, tag = 'scoped memory for tpu_custom_call.1']
    #allocation10 [shape = 'u8[4096]{0}', space=vmem, size = 0x1000, scoped, tag = 'output window, operand 0, single buffered']
    %15 = vsyncpa [#allocation3], 0
    %16 = vsyncpa [#allocation6], 0
    %17 = vsyncpa [#allocation9], 0
    %18 = vsyncpa [#allocation4], 0
    // Predicated region
    $region2: #{tpu_custom_call.1} parent=1 // pred_check
      _
    $region3: #{tpu_custom_call.1} parent=1 // pred_check_branch
      %20 = sbr.rel (0) target = $region5
    $region4: #{tpu_custom_call.1} parent=1 // pred_region
      _
    $region5: #{tpu_custom_call.1} parent=1 // pred_fallthru
      _
    // Predicated region
    $region6: #{tpu_custom_call.1} parent=1 // pred_check
      _
    $region7: #{tpu_custom_call.1} parent=1 // pred_check_branch
      %22 = sbr.rel (0) target = $region9
    $region8: #{tpu_custom_call.1} parent=1 // pred_region
      %24 = vsyncadd [#allocation3], 0
      %s25 = sshll.u32 %s1, 4
      %s26 = int_to_ptr.hbm [resolvable:$true] %s25
      %s27 = sshll.u32 [#allocation2], 4
      %s28 = int_to_ptr.vmem [resolvable:$true] %s27
      %33 = dma.hbm_to_vmem [thread:$0]  %s26, 2048, %s28, [#allocation3], 64, 64, 4
    $region9: #{tpu_custom_call.1} parent=1 // pred_fallthru
      _
    // Predicated region
    $region10: #{tpu_custom_call.1} parent=1 // pred_check
      _
    $region11: #{tpu_custom_call.1} parent=1 // pred_check_branch
      %35 = sbr.rel (0) target = $region13
    $region12: #{tpu_custom_call.1} parent=1 // pred_region
      _
    $region13: #{tpu_custom_call.1} parent=1 // pred_fallthru
      _
    // Predicated region
    $region14: #{tpu_custom_call.1} parent=1 // pred_check
      _
    $region15: #{tpu_custom_call.1} parent=1 // pred_check_branch
      %37 = sbr.rel (0) target = $region17
    $region16: #{tpu_custom_call.1} parent=1 // pred_region
      _
    $region17: #{tpu_custom_call.1} parent=1 // pred_fallthru
      _
    // Predicated region
    $region18: #{tpu_custom_call.1} parent=1 // pred_check
      _
    $region19: #{tpu_custom_call.1} parent=1 // pred_check_branch
      %39 = sbr.rel (0) target = $region21
    $region20: #{tpu_custom_call.1} parent=1 // pred_region
      _
    $region21: #{tpu_custom_call.1} parent=1 // pred_fallthru
      _
    // Predicated region
    $region22: #{tpu_custom_call.1} parent=1 // pred_check
      _
    $region23: #{tpu_custom_call.1} parent=1 // pred_check_branch
      %41 = sbr.rel (0) target = $region25
    $region24: #{tpu_custom_call.1} parent=1 // pred_region
      %43 = vsyncadd [#allocation6], 0
      %s44 = sshll.u32 %s5, 4
      %s45 = int_to_ptr.hbm [resolvable:$true] %s44
      %s46 = sshll.u32 [#allocation5], 4
      %s47 = int_to_ptr.vmem [resolvable:$true] %s46
      %52 = dma.hbm_to_vmem [thread:$0]  %s45, 3072, %s47, [#allocation6], 64, 64, 4
    $region25: #{tpu_custom_call.1} parent=1 // pred_fallthru
      _
    // Predicated region
    $region26: #{tpu_custom_call.1} parent=1 // pred_check
      _
    $region27: #{tpu_custom_call.1} parent=1 // pred_check_branch
      %54 = sbr.rel (0) target = $region29
    $region28: #{tpu_custom_call.1} parent=1 // pred_region
      %56 = vsyncadd [#allocation6], 0
      %s57 = sshll.u32 %s6, 4
      %s58 = int_to_ptr.hbm [resolvable:$true] %s57
      %s59 = sshll.u32 [#allocation7], 4
      %s60 = int_to_ptr.vmem [resolvable:$true] %s59
      %65 = dma.hbm_to_vmem [thread:$0]  %s58, 3072, %s60, [#allocation6], 64, 64, 4
    $region29: #{tpu_custom_call.1} parent=1 // pred_fallthru
      _
    // Predicated region
    $region30: #{tpu_custom_call.1} parent=1 // pred_check
      _
    $region31: #{tpu_custom_call.1} parent=1 // pred_check_branch
      %67 = sbr.rel (0) target = $region33
    $region32: #{tpu_custom_call.1} parent=1 // pred_region
      _
    $region33: #{tpu_custom_call.1} parent=1 // pred_fallthru
      _
    // Predicated region
    $region34: #{tpu_custom_call.1} parent=1 // pred_check
      _
    $region35: #{tpu_custom_call.1} parent=1 // pred_check_branch
      %69 = sbr.rel (0) target = $region37
    $region36: #{tpu_custom_call.1} parent=1 // pred_region
      %71 = vsyncadd [#allocation9], 0
      %s72 = sshll.u32 %s8, 4
      %s73 = int_to_ptr.hbm [resolvable:$true] %s72
      %s74 = sshll.u32 [#allocation8], 4
      %s75 = int_to_ptr.vmem [resolvable:$true] %s74
      %80 = dma.hbm_to_vmem [thread:$0]  %s73, 2048, %s75, [#allocation9], 128, 128, 8
    $region37: #{tpu_custom_call.1} parent=1 // pred_fallthru
      _
    // Predicated region
    $region38: #{tpu_custom_call.1} parent=1 // pred_check
      _
    $region39: #{tpu_custom_call.1} parent=1 // pred_check_branch
      %82 = sbr.rel (0) target = $region41
    $region40: #{tpu_custom_call.1} parent=1 // pred_region
      _
    $region41: #{tpu_custom_call.1} parent=1 // pred_fallthru
      _
    // Predicated region
    $region42: #{tpu_custom_call.1} parent=1 // pred_check
      _
    $region43: #{tpu_custom_call.1} parent=1 // pred_check_branch
      %84 = sbr.rel (0) target = $region45
    $region44: #{tpu_custom_call.1} parent=1 // pred_region
      %86 = dma.done [#allocation3], 2048
    $region45: #{tpu_custom_call.1} parent=1 // pred_fallthru
      _
    // Predicated region
    $region46: #{tpu_custom_call.1} parent=1 // pred_check
      _
    $region47: #{tpu_custom_call.1} parent=1 // pred_check_branch
      %88 = sbr.rel (0) target = $region49
    $region48: #{tpu_custom_call.1} parent=1 // pred_region
      %90 = dma.done [#allocation6], 3072
    $region49: #{tpu_custom_call.1} parent=1 // pred_fallthru
      _
    // Predicated region
    $region50: #{tpu_custom_call.1} parent=1 // pred_check
      _
    $region51: #{tpu_custom_call.1} parent=1 // pred_check_branch
      %92 = sbr.rel (0) target = $region53
    $region52: #{tpu_custom_call.1} parent=1 // pred_region
      %94 = dma.done [#allocation6], 3072
    $region53: #{tpu_custom_call.1} parent=1 // pred_fallthru
      _
    // Predicated region
    $region54: #{tpu_custom_call.1} parent=1 // pred_check
      _
    $region55: #{tpu_custom_call.1} parent=1 // pred_check_branch
      %96 = sbr.rel (0) target = $region57
    $region56: #{tpu_custom_call.1} parent=1 // pred_region
      %98 = dma.done [#allocation9], 2048
    $region57: #{tpu_custom_call.1} parent=1 // pred_fallthru
      _
    %v99 = vld [vmem:[%s0] sm:$0xff]
    %v100 = vld [vmem:[%s0 + $0x8] sm:$0xff]
    %v101 = vld [vmem:[%s0 + $0x10] sm:$0xff]
    %v102 = vld [vmem:[%s0 + $0x18] sm:$0xff]
    %v103 = vld [vmem:[%s0 + $0x20] sm:$0xff]
    %v104 = vld [vmem:[%s0 + $0x28] sm:$0xff]
    %v105 = vld [vmem:[%s0 + $0x30] sm:$0xff]
    %v106 = vld [vmem:[%s0 + $0x38] sm:$0xff]
    %v107 = vld [vmem:[%s0 + $0x40] sm:$0xff]
    %v108 = vld [vmem:[%s0 + $0x48] sm:$0xff]
    %v109 = vld [vmem:[%s0 + $0x50] sm:$0xff]
    %v110 = vld [vmem:[%s0 + $0x58] sm:$0xff]
    %v111 = vld [vmem:[%s0 + $0x60] sm:$0xff]
    %v112 = vld [vmem:[%s0 + $0x68] sm:$0xff]
    %v113 = vld [vmem:[%s0 + $0x70] sm:$0xff]
    %v114 = vld [vmem:[%s0 + $0x78] sm:$0xff]
    %v115 = vld [vmem:[%s0 + $0x80] sm:$0xff]
    %v116 = vld [vmem:[%s0 + $0x88] sm:$0xff]
    %v117 = vld [vmem:[%s0 + $0x90] sm:$0xff]
    %v118 = vld [vmem:[%s0 + $0x98] sm:$0xff]
    %v119 = vld [vmem:[%s0 + $0xa0] sm:$0xff]
    %v120 = vld [vmem:[%s0 + $0xa8] sm:$0xff]
    %v121 = vld [vmem:[%s0 + $0xb0] sm:$0xff]
    %v122 = vld [vmem:[%s0 + $0xb8] sm:$0xff]
    %v123 = vld [vmem:[%s0 + $0xc0] sm:$0xff]
    %v124 = vld [vmem:[%s0 + $0xc8] sm:$0xff]
    %v125 = vld [vmem:[%s0 + $0xd0] sm:$0xff]
    %v126 = vld [vmem:[%s0 + $0xd8] sm:$0xff]
    %v127 = vld [vmem:[%s0 + $0xe0] sm:$0xff]
    %v128 = vld [vmem:[%s0 + $0xe8] sm:$0xff]
    %v129 = vld [vmem:[%s0 + $0xf0] sm:$0xff]
    %v130 = vld [vmem:[%s0 + $0xf8] sm:$0xff]
    %v131 = vld [vmem:[%s2] sm:$0xff]
    %v132 = vld [vmem:[%s2 + $0x8] sm:$0xff]
    %v133 = vld [vmem:[%s2 + $0x10] sm:$0xff]
    %v134 = vld [vmem:[%s2 + $0x18] sm:$0xff]
    %v135 = vld [vmem:[%s2 + $0x20] sm:$0xff]
    %v136 = vld [vmem:[%s2 + $0x28] sm:$0xff]
    %v137 = vld [vmem:[%s2 + $0x30] sm:$0xff]
    %v138 = vld [vmem:[%s2 + $0x38] sm:$0xff]
    %v139 = vld [vmem:[%s2 + $0x40] sm:$0xff]
    %v140 = vld [vmem:[%s2 + $0x48] sm:$0xff]
    %v141 = vld [vmem:[%s2 + $0x50] sm:$0xff]
    %v142 = vld [vmem:[%s2 + $0x58] sm:$0xff]
    %v143 = vld [vmem:[%s2 + $0x60] sm:$0xff]
    %v144 = vld [vmem:[%s2 + $0x68] sm:$0xff]
    %v145 = vld [vmem:[%s2 + $0x70] sm:$0xff]
    %v146 = vld [vmem:[%s2 + $0x78] sm:$0xff]
    %v147 = vld [vmem:[%s2 + $0x80] sm:$0xff]
    %v148 = vld [vmem:[%s2 + $0x88] sm:$0xff]
    %v149 = vld [vmem:[%s2 + $0x90] sm:$0xff]
    %v150 = vld [vmem:[%s2 + $0x98] sm:$0xff]
    %v151 = vld [vmem:[%s2 + $0xa0] sm:$0xff]
    %v152 = vld [vmem:[%s2 + $0xa8] sm:$0xff]
    %v153 = vld [vmem:[%s2 + $0xb0] sm:$0xff]
    %v154 = vld [vmem:[%s2 + $0xb8] sm:$0xff]
    %v155 = vld [vmem:[%s2 + $0xc0] sm:$0xff]
    %v156 = vld [vmem:[%s2 + $0xc8] sm:$0xff]
    %v157 = vld [vmem:[%s2 + $0xd0] sm:$0xff]
    %v158 = vld [vmem:[%s2 + $0xd8] sm:$0xff]
    %v159 = vld [vmem:[%s2 + $0xe0] sm:$0xff]
    %v160 = vld [vmem:[%s2 + $0xe8] sm:$0xff]
    %v161 = vld [vmem:[%s2 + $0xf0] sm:$0xff]
    %v162 = vld [vmem:[%s2 + $0xf8] sm:$0xff]
    %v163 = vld [vmem:[#allocation2] sm:$0xf]
    %v164 = vld [vmem:[#allocation2 + $0x4] sm:$0xf]
    %v165 = vld [vmem:[#allocation2 + $0x8] sm:$0xf]
    %v166 = vld [vmem:[#allocation2 + $0xc] sm:$0xf]
    %v167 = vld [vmem:[#allocation2 + $0x10] sm:$0xf]
    %v168 = vld [vmem:[#allocation2 + $0x14] sm:$0xf]
    %v169 = vld [vmem:[#allocation2 + $0x18] sm:$0xf]
    %v170 = vld [vmem:[#allocation2 + $0x1c] sm:$0xf]
    %v171 = vld [vmem:[#allocation2 + $0x20] sm:$0xf]
    %v172 = vld [vmem:[#allocation2 + $0x24] sm:$0xf]
    %v173 = vld [vmem:[#allocation2 + $0x28] sm:$0xf]
    %v174 = vld [vmem:[#allocation2 + $0x2c] sm:$0xf]
    %v175 = vld [vmem:[#allocation2 + $0x30] sm:$0xf]
    %v176 = vld [vmem:[#allocation2 + $0x34] sm:$0xf]
    %v177 = vld [vmem:[#allocation2 + $0x38] sm:$0xf]
    %v178 = vld [vmem:[#allocation2 + $0x3c] sm:$0xf]
    %v179 = vld [vmem:[#allocation2 + $0x40] sm:$0xf]
    %v180 = vld [vmem:[#allocation2 + $0x44] sm:$0xf]
    %v181 = vld [vmem:[#allocation2 + $0x48] sm:$0xf]
    %v182 = vld [vmem:[#allocation2 + $0x4c] sm:$0xf]
    %v183 = vld [vmem:[#allocation2 + $0x50] sm:$0xf]
    %v184 = vld [vmem:[#allocation2 + $0x54] sm:$0xf]
    %v185 = vld [vmem:[#allocation2 + $0x58] sm:$0xf]
    %v186 = vld [vmem:[#allocation2 + $0x5c] sm:$0xf]
    %v187 = vld [vmem:[#allocation2 + $0x60] sm:$0xf]
    %v188 = vld [vmem:[#allocation2 + $0x64] sm:$0xf]
    %v189 = vld [vmem:[#allocation2 + $0x68] sm:$0xf]
    %v190 = vld [vmem:[#allocation2 + $0x6c] sm:$0xf]
    %v191 = vld [vmem:[#allocation2 + $0x70] sm:$0xf]
    %v192 = vld [vmem:[#allocation2 + $0x74] sm:$0xf]
    %v193 = vld [vmem:[#allocation2 + $0x78] sm:$0xf]
    %v194 = vld [vmem:[#allocation2 + $0x7c] sm:$0xf]
    %v227 = vunpack.c.l.b16 %v99
    %v228 = vunpack.c.h.b16 %v99
    %v229 = vunpack.c.l.b16 %v100
    %v230 = vunpack.c.h.b16 %v100
    %v231 = vunpack.c.l.b16 %v101
    %v232 = vunpack.c.h.b16 %v101
    %v233 = vunpack.c.l.b16 %v102
    %v234 = vunpack.c.h.b16 %v102
    %v235 = vunpack.c.l.b16 %v103
    %v236 = vunpack.c.h.b16 %v103
    %v237 = vunpack.c.l.b16 %v104
    %v238 = vunpack.c.h.b16 %v104
    %v239 = vunpack.c.l.b16 %v105
    %v240 = vunpack.c.h.b16 %v105
    %v241 = vunpack.c.l.b16 %v106
    %v242 = vunpack.c.h.b16 %v106
    %v243 = vunpack.c.l.b16 %v107
    %v244 = vunpack.c.h.b16 %v107
    %v245 = vunpack.c.l.b16 %v108
    %v246 = vunpack.c.h.b16 %v108
    %v247 = vunpack.c.l.b16 %v109
    %v248 = vunpack.c.h.b16 %v109
    %v249 = vunpack.c.l.b16 %v110
    %v250 = vunpack.c.h.b16 %v110
    %v251 = vunpack.c.l.b16 %v111
    %v252 = vunpack.c.h.b16 %v111
    %v253 = vunpack.c.l.b16 %v112
    %v254 = vunpack.c.h.b16 %v112
    %v255 = vunpack.c.l.b16 %v113
    %v256 = vunpack.c.h.b16 %v113
    %v257 = vunpack.c.l.b16 %v114
    %v258 = vunpack.c.h.b16 %v114
    %v259 = vunpack.c.l.b16 %v115
    %v260 = vunpack.c.h.b16 %v115
    %v261 = vunpack.c.l.b16 %v116
    %v262 = vunpack.c.h.b16 %v116
    %v263 = vunpack.c.l.b16 %v117
    %v264 = vunpack.c.h.b16 %v117
    %v265 = vunpack.c.l.b16 %v118
    %v266 = vunpack.c.h.b16 %v118
    %v267 = vunpack.c.l.b16 %v119
    %v268 = vunpack.c.h.b16 %v119
    %v269 = vunpack.c.l.b16 %v120
    %v270 = vunpack.c.h.b16 %v120
    %v271 = vunpack.c.l.b16 %v121
    %v272 = vunpack.c.h.b16 %v121
    %v273 = vunpack.c.l.b16 %v122
    %v274 = vunpack.c.h.b16 %v122
    %v275 = vunpack.c.l.b16 %v123
    %v276 = vunpack.c.h.b16 %v123
    %v277 = vunpack.c.l.b16 %v124
    %v278 = vunpack.c.h.b16 %v124
    %v279 = vunpack.c.l.b16 %v125
    %v280 = vunpack.c.h.b16 %v125
    %v281 = vunpack.c.l.b16 %v126
    %v282 = vunpack.c.h.b16 %v126
    %v283 = vunpack.c.l.b16 %v127
    %v284 = vunpack.c.h.b16 %v127
    %v285 = vunpack.c.l.b16 %v128
    %v286 = vunpack.c.h.b16 %v128
    %v287 = vunpack.c.l.b16 %v129
    %v288 = vunpack.c.h.b16 %v129
    %v289 = vunpack.c.l.b16 %v130
    %v290 = vunpack.c.h.b16 %v130
    %v291 = vpack.c.b16 %v229, %v227
    %v292 = vpack.c.b16 %v230, %v228
    %v293 = vpack.c.b16 %v233, %v231
    %v294 = vpack.c.b16 %v234, %v232
    %v295 = vpack.c.b16 %v237, %v235
    %v296 = vpack.c.b16 %v238, %v236
    %v297 = vpack.c.b16 %v241, %v239
    %v298 = vpack.c.b16 %v242, %v240
    %v299 = vpack.c.b16 %v245, %v243
    %v300 = vpack.c.b16 %v246, %v244
    %v301 = vpack.c.b16 %v249, %v247
    %v302 = vpack.c.b16 %v250, %v248
    %v303 = vpack.c.b16 %v253, %v251
    %v304 = vpack.c.b16 %v254, %v252
    %v305 = vpack.c.b16 %v257, %v255
    %v306 = vpack.c.b16 %v258, %v256
    %v307 = vpack.c.b16 %v261, %v259
    %v308 = vpack.c.b16 %v262, %v260
    %v309 = vpack.c.b16 %v265, %v263
    %v310 = vpack.c.b16 %v266, %v264
    %v311 = vpack.c.b16 %v269, %v267
    %v312 = vpack.c.b16 %v270, %v268
    %v313 = vpack.c.b16 %v273, %v271
    %v314 = vpack.c.b16 %v274, %v272
    %v315 = vpack.c.b16 %v277, %v275
    %v316 = vpack.c.b16 %v278, %v276
    %v317 = vpack.c.b16 %v281, %v279
    %v318 = vpack.c.b16 %v282, %v280
    %v319 = vpack.c.b16 %v285, %v283
    %v320 = vpack.c.b16 %v286, %v284
    %v321 = vpack.c.b16 %v289, %v287
    %v322 = vpack.c.b16 %v290, %v288
    %v387 = vunpack.c.l.b16 %v163
    %v388 = vunpack.c.l.b16 %v164
    %v389 = vunpack.c.l.b16 %v165
    %v390 = vunpack.c.l.b16 %v166
    %v391 = vunpack.c.l.b16 %v167
    %v392 = vunpack.c.l.b16 %v168
    %v393 = vunpack.c.l.b16 %v169
    %v394 = vunpack.c.l.b16 %v170
    %v395 = vunpack.c.l.b16 %v171
    %v396 = vunpack.c.l.b16 %v172
    %v397 = vunpack.c.l.b16 %v173
    %v398 = vunpack.c.l.b16 %v174
    %v399 = vunpack.c.l.b16 %v175
    %v400 = vunpack.c.l.b16 %v176
    %v401 = vunpack.c.l.b16 %v177
    %v402 = vunpack.c.l.b16 %v178
    %v403 = vunpack.c.l.b16 %v179
    %v404 = vunpack.c.l.b16 %v180
    %v405 = vunpack.c.l.b16 %v181
    %v406 = vunpack.c.l.b16 %v182
    %v407 = vunpack.c.l.b16 %v183
    %v408 = vunpack.c.l.b16 %v184
    %v409 = vunpack.c.l.b16 %v185
    %v410 = vunpack.c.l.b16 %v186
    %v411 = vunpack.c.l.b16 %v187
    %v412 = vunpack.c.l.b16 %v188
    %v413 = vunpack.c.l.b16 %v189
    %v414 = vunpack.c.l.b16 %v190
    %v415 = vunpack.c.l.b16 %v191
    %v416 = vunpack.c.l.b16 %v192
    %v417 = vunpack.c.l.b16 %v193
    %v418 = vunpack.c.l.b16 %v194
    %v419 = vpack.c.b16 %v388, %v387
    %v420 = vpack.c.b16 %v390, %v389
    %v421 = vpack.c.b16 %v392, %v391
    %v422 = vpack.c.b16 %v394, %v393
    %v423 = vpack.c.b16 %v396, %v395
    %v424 = vpack.c.b16 %v398, %v397
    %v425 = vpack.c.b16 %v400, %v399
    %v426 = vpack.c.b16 %v402, %v401
    %v427 = vpack.c.b16 %v404, %v403
    %v428 = vpack.c.b16 %v406, %v405
    %v429 = vpack.c.b16 %v408, %v407
    %v430 = vpack.c.b16 %v410, %v409
    %v431 = vpack.c.b16 %v412, %v411
    %v432 = vpack.c.b16 %v414, %v413
    %v433 = vpack.c.b16 %v416, %v415
    %v434 = vpack.c.b16 %v418, %v417
    %451 = vmatpush.bf16.msra.mxu0 %v426
    %452 = vmatpush.bf16.msra.mxu0 %v425
    %453 = vmatpush.bf16.msra.mxu0 %v424
    %454 = vmatpush.bf16.msra.mxu0 %v423
    %455 = vmatpush.bf16.msra.mxu0 %v422
    %456 = vmatpush.bf16.msra.mxu0 %v421
    %457 = vmatpush.bf16.msra.mxu0 %v420
    %458 = vmatpush.bf16.msra.mxu0 %v419
    %459 = vmatmul.bf16.gmra.mxu0 %v291
    %v460 = vpop.f32.mrf.mxu0
    %v461 = vadd.f32 0.0, %v460
    %v462 = vpop.f32.mrf.mxu0
    %v463 = vadd.f32 0.0, %v462
    %464 = vmatmul.bf16.gmra.mxu0 %v293
    %v465 = vpop.f32.mrf.mxu0
    %v466 = vadd.f32 0.0, %v465
    %v467 = vpop.f32.mrf.mxu0
    %v468 = vadd.f32 0.0, %v467
    %469 = vmatmul.bf16.gmra.mxu0 %v295
    %v470 = vpop.f32.mrf.mxu0
    %v471 = vadd.f32 0.0, %v470
    %v472 = vpop.f32.mrf.mxu0
    %v473 = vadd.f32 0.0, %v472
    %474 = vmatmul.bf16.gmra.mxu0 %v297
    %v475 = vpop.f32.mrf.mxu0
    %v476 = vadd.f32 0.0, %v475
    %v477 = vpop.f32.mrf.mxu0
    %v478 = vadd.f32 0.0, %v477
    %479 = vmatmul.bf16.gmra.mxu0 %v299
    %v480 = vpop.f32.mrf.mxu0
    %v481 = vadd.f32 0.0, %v480
    %v482 = vpop.f32.mrf.mxu0
    %v483 = vadd.f32 0.0, %v482
    %484 = vmatmul.bf16.gmra.mxu0 %v301
    %v485 = vpop.f32.mrf.mxu0
    %v486 = vadd.f32 0.0, %v485
    %v487 = vpop.f32.mrf.mxu0
    %v488 = vadd.f32 0.0, %v487
    %489 = vmatmul.bf16.gmra.mxu0 %v303
    %v490 = vpop.f32.mrf.mxu0
    %v491 = vadd.f32 0.0, %v490
    %v492 = vpop.f32.mrf.mxu0
    %v493 = vadd.f32 0.0, %v492
    %494 = vmatmul.bf16.gmra.mxu0 %v305
    %v495 = vpop.f32.mrf.mxu0
    %v496 = vadd.f32 0.0, %v495
    %v497 = vpop.f32.mrf.mxu0
    %v498 = vadd.f32 0.0, %v497
    %499 = vmatmul.bf16.gmra.mxu0 %v307
    %v500 = vpop.f32.mrf.mxu0
    %v501 = vadd.f32 0.0, %v500
    %v502 = vpop.f32.mrf.mxu0
    %v503 = vadd.f32 0.0, %v502
    %504 = vmatmul.bf16.gmra.mxu0 %v309
    %v505 = vpop.f32.mrf.mxu0
    %v506 = vadd.f32 0.0, %v505
    %v507 = vpop.f32.mrf.mxu0
    %v508 = vadd.f32 0.0, %v507
    %509 = vmatmul.bf16.gmra.mxu0 %v311
    %v510 = vpop.f32.mrf.mxu0
    %v511 = vadd.f32 0.0, %v510
    %v512 = vpop.f32.mrf.mxu0
    %v513 = vadd.f32 0.0, %v512
    %514 = vmatmul.bf16.gmra.mxu0 %v313
    %v515 = vpop.f32.mrf.mxu0
    %v516 = vadd.f32 0.0, %v515
    %v517 = vpop.f32.mrf.mxu0
    %v518 = vadd.f32 0.0, %v517
    %519 = vmatmul.bf16.gmra.mxu0 %v315
    %v520 = vpop.f32.mrf.mxu0
    %v521 = vadd.f32 0.0, %v520
    %v522 = vpop.f32.mrf.mxu0
    %v523 = vadd.f32 0.0, %v522
    %524 = vmatmul.bf16.gmra.mxu0 %v317
    %v525 = vpop.f32.mrf.mxu0
    %v526 = vadd.f32 0.0, %v525
    %v527 = vpop.f32.mrf.mxu0
    %v528 = vadd.f32 0.0, %v527
    %529 = vmatmul.bf16.gmra.mxu0 %v319
    %v530 = vpop.f32.mrf.mxu0
    %v531 = vadd.f32 0.0, %v530
    %v532 = vpop.f32.mrf.mxu0
    %v533 = vadd.f32 0.0, %v532
    %534 = vmatmul.bf16.gmra.mxu0 %v321
    %v535 = vpop.f32.mrf.mxu0
    %v536 = vadd.f32 0.0, %v535
    %v537 = vpop.f32.mrf.mxu0
    %v538 = vadd.f32 0.0, %v537
    %539 = vdwg.mxu0
    %540 = vmatpush.bf16.msra.mxu0 %v434
    %541 = vmatpush.bf16.msra.mxu0 %v433
    %542 = vmatpush.bf16.msra.mxu0 %v432
    %543 = vmatpush.bf16.msra.mxu0 %v431
    %544 = vmatpush.bf16.msra.mxu0 %v430
    %545 = vmatpush.bf16.msra.mxu0 %v429
    %546 = vmatpush.bf16.msra.mxu0 %v428
    %547 = vmatpush.bf16.msra.mxu0 %v427
    %548 = vmatmul.bf16.gmra.mxu0 %v292
    %v549 = vpop.f32.mrf.mxu0
    %v550 = vadd.f32 %v461, %v549
    %v551 = vpop.f32.mrf.mxu0
    %v552 = vadd.f32 %v463, %v551
    %553 = vmatmul.bf16.gmra.mxu0 %v294
    %v554 = vpop.f32.mrf.mxu0
    %v555 = vadd.f32 %v466, %v554
    %v556 = vpop.f32.mrf.mxu0
    %v557 = vadd.f32 %v468, %v556
    %558 = vmatmul.bf16.gmra.mxu0 %v296
    %v559 = vpop.f32.mrf.mxu0
    %v560 = vadd.f32 %v471, %v559
    %v561 = vpop.f32.mrf.mxu0
    %v562 = vadd.f32 %v473, %v561
    %563 = vmatmul.bf16.gmra.mxu0 %v298
    %v564 = vpop.f32.mrf.mxu0
    %v565 = vadd.f32 %v476, %v564
    %v566 = vpop.f32.mrf.mxu0
    %v567 = vadd.f32 %v478, %v566
    %568 = vmatmul.bf16.gmra.mxu0 %v300
    %v569 = vpop.f32.mrf.mxu0
    %v570 = vadd.f32 %v481, %v569
    %v571 = vpop.f32.mrf.mxu0
    %v572 = vadd.f32 %v483, %v571
    %573 = vmatmul.bf16.gmra.mxu0 %v302
    %v574 = vpop.f32.mrf.mxu0
    %v575 = vadd.f32 %v486, %v574
    %v576 = vpop.f32.mrf.mxu0
    %v577 = vadd.f32 %v488, %v576
    %578 = vmatmul.bf16.gmra.mxu0 %v304
    %v579 = vpop.f32.mrf.mxu0
    %v580 = vadd.f32 %v491, %v579
    %v581 = vpop.f32.mrf.mxu0
    %v582 = vadd.f32 %v493, %v581
    %583 = vmatmul.bf16.gmra.mxu0 %v306
    %v584 = vpop.f32.mrf.mxu0
    %v585 = vadd.f32 %v496, %v584
    %v586 = vpop.f32.mrf.mxu0
    %v587 = vadd.f32 %v498, %v586
    %588 = vmatmul.bf16.gmra.mxu0 %v308
    %v589 = vpop.f32.mrf.mxu0
    %v590 = vadd.f32 %v501, %v589
    %v591 = vpop.f32.mrf.mxu0
    %v592 = vadd.f32 %v503, %v591
    %593 = vmatmul.bf16.gmra.mxu0 %v310
    %v594 = vpop.f32.mrf.mxu0
    %v595 = vadd.f32 %v506, %v594
    %v596 = vpop.f32.mrf.mxu0
    %v597 = vadd.f32 %v508, %v596
    %598 = vmatmul.bf16.gmra.mxu0 %v312
    %v599 = vpop.f32.mrf.mxu0
    %v600 = vadd.f32 %v511, %v599
    %v601 = vpop.f32.mrf.mxu0
    %v602 = vadd.f32 %v513, %v601
    %603 = vmatmul.bf16.gmra.mxu0 %v314
    %v604 = vpop.f32.mrf.mxu0
    %v605 = vadd.f32 %v516, %v604
    %v606 = vpop.f32.mrf.mxu0
    %v607 = vadd.f32 %v518, %v606
    %608 = vmatmul.bf16.gmra.mxu0 %v316
    %v609 = vpop.f32.mrf.mxu0
    %v610 = vadd.f32 %v521, %v609
    %v611 = vpop.f32.mrf.mxu0
    %v612 = vadd.f32 %v523, %v611
    %613 = vmatmul.bf16.gmra.mxu0 %v318
    %v614 = vpop.f32.mrf.mxu0
    %v615 = vadd.f32 %v526, %v614
    %v616 = vpop.f32.mrf.mxu0
    %v617 = vadd.f32 %v528, %v616
    %618 = vmatmul.bf16.gmra.mxu0 %v320
    %v619 = vpop.f32.mrf.mxu0
    %v620 = vadd.f32 %v531, %v619
    %v621 = vpop.f32.mrf.mxu0
    %v622 = vadd.f32 %v533, %v621
    %623 = vmatmul.bf16.gmra.mxu0 %v322
    %v624 = vpop.f32.mrf.mxu0
    %v625 = vadd.f32 %v536, %v624
    %v626 = vpop.f32.mrf.mxu0
    %v627 = vadd.f32 %v538, %v626
    %628 = vdwg.mxu0
    %v629 = vpack.c.bf16 %v552, %v550
    %v630 = vpack.c.bf16 %v557, %v555
    %v631 = vpack.c.bf16 %v562, %v560
    %v632 = vpack.c.bf16 %v567, %v565
    %v633 = vpack.c.bf16 %v572, %v570
    %v634 = vpack.c.bf16 %v577, %v575
    %v635 = vpack.c.bf16 %v582, %v580
    %v636 = vpack.c.bf16 %v587, %v585
    %v637 = vpack.c.bf16 %v592, %v590
    %v638 = vpack.c.bf16 %v597, %v595
    %v639 = vpack.c.bf16 %v602, %v600
    %v640 = vpack.c.bf16 %v607, %v605
    %v641 = vpack.c.bf16 %v612, %v610
    %v642 = vpack.c.bf16 %v617, %v615
    %v643 = vpack.c.bf16 %v622, %v620
    %v644 = vpack.c.bf16 %v627, %v625
    %v645 = vld [vmem:[#allocation5] sm:$0xf]
    %v646 = vld [vmem:[#allocation5 + $0x4] sm:$0xf]
    %v647 = vld [vmem:[#allocation5 + $0x8] sm:$0xf]
    %v648 = vld [vmem:[#allocation5 + $0xc] sm:$0xf]
    %v649 = vld [vmem:[#allocation5 + $0x10] sm:$0xf]
    %v650 = vld [vmem:[#allocation5 + $0x14] sm:$0xf]
    %v651 = vld [vmem:[#allocation5 + $0x18] sm:$0xf]
    %v652 = vld [vmem:[#allocation5 + $0x1c] sm:$0xf]
    %v653 = vld [vmem:[#allocation5 + $0x20] sm:$0xf]
    %v654 = vld [vmem:[#allocation5 + $0x24] sm:$0xf]
    %v655 = vld [vmem:[#allocation5 + $0x28] sm:$0xf]
    %v656 = vld [vmem:[#allocation5 + $0x2c] sm:$0xf]
    %v657 = vld [vmem:[#allocation5 + $0x30] sm:$0xf]
    %v658 = vld [vmem:[#allocation5 + $0x34] sm:$0xf]
    %v659 = vld [vmem:[#allocation5 + $0x38] sm:$0xf]
    %v660 = vld [vmem:[#allocation5 + $0x3c] sm:$0xf]
    %v661 = vld [vmem:[#allocation7] sm:$0xf]
    %v662 = vld [vmem:[#allocation7 + $0x4] sm:$0xf]
    %v663 = vld [vmem:[#allocation7 + $0x8] sm:$0xf]
    %v664 = vld [vmem:[#allocation7 + $0xc] sm:$0xf]
    %v665 = vld [vmem:[#allocation7 + $0x10] sm:$0xf]
    %v666 = vld [vmem:[#allocation7 + $0x14] sm:$0xf]
    %v667 = vld [vmem:[#allocation7 + $0x18] sm:$0xf]
    %v668 = vld [vmem:[#allocation7 + $0x1c] sm:$0xf]
    %v669 = vld [vmem:[#allocation7 + $0x20] sm:$0xf]
    %v670 = vld [vmem:[#allocation7 + $0x24] sm:$0xf]
    %v671 = vld [vmem:[#allocation7 + $0x28] sm:$0xf]
    %v672 = vld [vmem:[#allocation7 + $0x2c] sm:$0xf]
    %v673 = vld [vmem:[#allocation7 + $0x30] sm:$0xf]
    %v674 = vld [vmem:[#allocation7 + $0x34] sm:$0xf]
    %v675 = vld [vmem:[#allocation7 + $0x38] sm:$0xf]
    %v676 = vld [vmem:[#allocation7 + $0x3c] sm:$0xf]
    %v693 = vunpack.c.l.b16 %v661
    %v694 = vunpack.c.l.b16 %v662
    %v695 = vunpack.c.l.b16 %v663
    %v696 = vunpack.c.l.b16 %v664
    %v697 = vunpack.c.l.b16 %v665
    %v698 = vunpack.c.l.b16 %v666
    %v699 = vunpack.c.l.b16 %v667
    %v700 = vunpack.c.l.b16 %v668
    %v701 = vunpack.c.l.b16 %v669
    %v702 = vunpack.c.l.b16 %v670
    %v703 = vunpack.c.l.b16 %v671
    %v704 = vunpack.c.l.b16 %v672
    %v705 = vunpack.c.l.b16 %v673
    %v706 = vunpack.c.l.b16 %v674
    %v707 = vunpack.c.l.b16 %v675
    %v708 = vunpack.c.l.b16 %v676
    %v709 = vpack.c.b16 %v694, %v693
    %v710 = vpack.c.b16 %v696, %v695
    %v711 = vpack.c.b16 %v698, %v697
    %v712 = vpack.c.b16 %v700, %v699
    %v713 = vpack.c.b16 %v702, %v701
    %v714 = vpack.c.b16 %v704, %v703
    %v715 = vpack.c.b16 %v706, %v705
    %v716 = vpack.c.b16 %v708, %v707
    %725 = vmatpush.bf16.msra.mxu0 %v716
    %726 = vmatpush.bf16.msra.mxu0 %v715
    %727 = vmatpush.bf16.msra.mxu0 %v714
    %728 = vmatpush.bf16.msra.mxu0 %v713
    %729 = vmatpush.bf16.msra.mxu0 %v712
    %730 = vmatpush.bf16.msra.mxu0 %v711
    %731 = vmatpush.bf16.msra.mxu0 %v710
    %732 = vmatpush.bf16.msra.mxu0 %v709
    %733 = vmatmul.bf16.gmra.mxu0 %v419
    %v734 = vpop.f32.mrf.mxu0
    %v735 = vadd.f32 0.0, %v734
    %v736 = vpop.f32.mrf.mxu0
    %v737 = vadd.f32 0.0, %v736
    %738 = vmatmul.bf16.gmra.mxu0 %v420
    %v739 = vpop.f32.mrf.mxu0
    %v740 = vadd.f32 0.0, %v739
    %v741 = vpop.f32.mrf.mxu0
    %v742 = vadd.f32 0.0, %v741
    %743 = vmatmul.bf16.gmra.mxu0 %v421
    %v744 = vpop.f32.mrf.mxu0
    %v745 = vadd.f32 0.0, %v744
    %v746 = vpop.f32.mrf.mxu0
    %v747 = vadd.f32 0.0, %v746
    %748 = vmatmul.bf16.gmra.mxu0 %v422
    %v749 = vpop.f32.mrf.mxu0
    %v750 = vadd.f32 0.0, %v749
    %v751 = vpop.f32.mrf.mxu0
    %v752 = vadd.f32 0.0, %v751
    %753 = vmatmul.bf16.gmra.mxu0 %v423
    %v754 = vpop.f32.mrf.mxu0
    %v755 = vadd.f32 0.0, %v754
    %v756 = vpop.f32.mrf.mxu0
    %v757 = vadd.f32 0.0, %v756
    %758 = vmatmul.bf16.gmra.mxu0 %v424
    %v759 = vpop.f32.mrf.mxu0
    %v760 = vadd.f32 0.0, %v759
    %v761 = vpop.f32.mrf.mxu0
    %v762 = vadd.f32 0.0, %v761
    %763 = vmatmul.bf16.gmra.mxu0 %v425
    %v764 = vpop.f32.mrf.mxu0
    %v765 = vadd.f32 0.0, %v764
    %v766 = vpop.f32.mrf.mxu0
    %v767 = vadd.f32 0.0, %v766
    %768 = vmatmul.bf16.gmra.mxu0 %v426
    %v769 = vpop.f32.mrf.mxu0
    %v770 = vadd.f32 0.0, %v769
    %v771 = vpop.f32.mrf.mxu0
    %v772 = vadd.f32 0.0, %v771
    %773 = vmatmul.bf16.gmra.mxu0 %v427
    %v774 = vpop.f32.mrf.mxu0
    %v775 = vadd.f32 0.0, %v774
    %v776 = vpop.f32.mrf.mxu0
    %v777 = vadd.f32 0.0, %v776
    %778 = vmatmul.bf16.gmra.mxu0 %v428
    %v779 = vpop.f32.mrf.mxu0
    %v780 = vadd.f32 0.0, %v779
    %v781 = vpop.f32.mrf.mxu0
    %v782 = vadd.f32 0.0, %v781
    %783 = vmatmul.bf16.gmra.mxu0 %v429
    %v784 = vpop.f32.mrf.mxu0
    %v785 = vadd.f32 0.0, %v784
    %v786 = vpop.f32.mrf.mxu0
    %v787 = vadd.f32 0.0, %v786
    %788 = vmatmul.bf16.gmra.mxu0 %v430
    %v789 = vpop.f32.mrf.mxu0
    %v790 = vadd.f32 0.0, %v789
    %v791 = vpop.f32.mrf.mxu0
    %v792 = vadd.f32 0.0, %v791
    %793 = vmatmul.bf16.gmra.mxu0 %v431
    %v794 = vpop.f32.mrf.mxu0
    %v795 = vadd.f32 0.0, %v794
    %v796 = vpop.f32.mrf.mxu0
    %v797 = vadd.f32 0.0, %v796
    %798 = vmatmul.bf16.gmra.mxu0 %v432
    %v799 = vpop.f32.mrf.mxu0
    %v800 = vadd.f32 0.0, %v799
    %v801 = vpop.f32.mrf.mxu0
    %v802 = vadd.f32 0.0, %v801
    %803 = vmatmul.bf16.gmra.mxu0 %v433
    %v804 = vpop.f32.mrf.mxu0
    %v805 = vadd.f32 0.0, %v804
    %v806 = vpop.f32.mrf.mxu0
    %v807 = vadd.f32 0.0, %v806
    %808 = vmatmul.bf16.gmra.mxu0 %v434
    %v809 = vpop.f32.mrf.mxu0
    %v810 = vadd.f32 0.0, %v809
    %v811 = vpop.f32.mrf.mxu0
    %v812 = vadd.f32 0.0, %v811
    %813 = vdwg.mxu0
    %v830 = vunpack.c.l.b16 %v645
    %v831 = vunpack.c.l.b16 %v646
    %v832 = vunpack.c.l.b16 %v647
    %v833 = vunpack.c.l.b16 %v648
    %v834 = vunpack.c.l.b16 %v649
    %v835 = vunpack.c.l.b16 %v650
    %v836 = vunpack.c.l.b16 %v651
    %v837 = vunpack.c.l.b16 %v652
    %v838 = vunpack.c.l.b16 %v653
    %v839 = vunpack.c.l.b16 %v654
    %v840 = vunpack.c.l.b16 %v655
    %v841 = vunpack.c.l.b16 %v656
    %v842 = vunpack.c.l.b16 %v657
    %v843 = vunpack.c.l.b16 %v658
    %v844 = vunpack.c.l.b16 %v659
    %v845 = vunpack.c.l.b16 %v660
    %v846 = vpack.c.b16 %v831, %v830
    %v847 = vpack.c.b16 %v833, %v832
    %v848 = vpack.c.b16 %v835, %v834
    %v849 = vpack.c.b16 %v837, %v836
    %v850 = vpack.c.b16 %v839, %v838
    %v851 = vpack.c.b16 %v841, %v840
    %v852 = vpack.c.b16 %v843, %v842
    %v853 = vpack.c.b16 %v845, %v844
    %862 = vmatpush.bf16.msra.mxu0 %v853
    %863 = vmatpush.bf16.msra.mxu0 %v852
    %864 = vmatpush.bf16.msra.mxu0 %v851
    %865 = vmatpush.bf16.msra.mxu0 %v850
    %866 = vmatpush.bf16.msra.mxu0 %v849
    %867 = vmatpush.bf16.msra.mxu0 %v848
    %868 = vmatpush.bf16.msra.mxu0 %v847
    %869 = vmatpush.bf16.msra.mxu0 %v846
    %870 = vmatmul.bf16.gmra.mxu0 %v629
    %v871 = vpop.f32.mrf.mxu0
    %v872 = vadd.f32 %v735, %v871
    %v873 = vpop.f32.mrf.mxu0
    %v874 = vadd.f32 %v737, %v873
    %875 = vmatmul.bf16.gmra.mxu0 %v630
    %v876 = vpop.f32.mrf.mxu0
    %v877 = vadd.f32 %v740, %v876
    %v878 = vpop.f32.mrf.mxu0
    %v879 = vadd.f32 %v742, %v878
    %880 = vmatmul.bf16.gmra.mxu0 %v631
    %v881 = vpop.f32.mrf.mxu0
    %v882 = vadd.f32 %v745, %v881
    %v883 = vpop.f32.mrf.mxu0
    %v884 = vadd.f32 %v747, %v883
    %885 = vmatmul.bf16.gmra.mxu0 %v632
    %v886 = vpop.f32.mrf.mxu0
    %v887 = vadd.f32 %v750, %v886
    %v888 = vpop.f32.mrf.mxu0
    %v889 = vadd.f32 %v752, %v888
    %890 = vmatmul.bf16.gmra.mxu0 %v633
    %v891 = vpop.f32.mrf.mxu0
    %v892 = vadd.f32 %v755, %v891
    %v893 = vpop.f32.mrf.mxu0
    %v894 = vadd.f32 %v757, %v893
    %895 = vmatmul.bf16.gmra.mxu0 %v634
    %v896 = vpop.f32.mrf.mxu0
    %v897 = vadd.f32 %v760, %v896
    %v898 = vpop.f32.mrf.mxu0
    %v899 = vadd.f32 %v762, %v898
    %900 = vmatmul.bf16.gmra.mxu0 %v635
    %v901 = vpop.f32.mrf.mxu0
    %v902 = vadd.f32 %v765, %v901
    %v903 = vpop.f32.mrf.mxu0
    %v904 = vadd.f32 %v767, %v903
    %905 = vmatmul.bf16.gmra.mxu0 %v636
    %v906 = vpop.f32.mrf.mxu0
    %v907 = vadd.f32 %v770, %v906
    %v908 = vpop.f32.mrf.mxu0
    %v909 = vadd.f32 %v772, %v908
    %910 = vmatmul.bf16.gmra.mxu0 %v637
    %v911 = vpop.f32.mrf.mxu0
    %v912 = vadd.f32 %v775, %v911
    %v913 = vpop.f32.mrf.mxu0
    %v914 = vadd.f32 %v777, %v913
    %915 = vmatmul.bf16.gmra.mxu0 %v638
    %v916 = vpop.f32.mrf.mxu0
    %v917 = vadd.f32 %v780, %v916
    %v918 = vpop.f32.mrf.mxu0
    %v919 = vadd.f32 %v782, %v918
    %920 = vmatmul.bf16.gmra.mxu0 %v639
    %v921 = vpop.f32.mrf.mxu0
    %v922 = vadd.f32 %v785, %v921
    %v923 = vpop.f32.mrf.mxu0
    %v924 = vadd.f32 %v787, %v923
    %925 = vmatmul.bf16.gmra.mxu0 %v640
    %v926 = vpop.f32.mrf.mxu0
    %v927 = vadd.f32 %v790, %v926
    %v928 = vpop.f32.mrf.mxu0
    %v929 = vadd.f32 %v792, %v928
    %930 = vmatmul.bf16.gmra.mxu0 %v641
    %v931 = vpop.f32.mrf.mxu0
    %v932 = vadd.f32 %v795, %v931
    %v933 = vpop.f32.mrf.mxu0
    %v934 = vadd.f32 %v797, %v933
    %935 = vmatmul.bf16.gmra.mxu0 %v642
    %v936 = vpop.f32.mrf.mxu0
    %v937 = vadd.f32 %v800, %v936
    %v938 = vpop.f32.mrf.mxu0
    %v939 = vadd.f32 %v802, %v938
    %940 = vmatmul.bf16.gmra.mxu0 %v643
    %v941 = vpop.f32.mrf.mxu0
    %v942 = vadd.f32 %v805, %v941
    %v943 = vpop.f32.mrf.mxu0
    %v944 = vadd.f32 %v807, %v943
    %945 = vmatmul.bf16.gmra.mxu0 %v644
    %v946 = vpop.f32.mrf.mxu0
    %v947 = vadd.f32 %v810, %v946
    %v948 = vpop.f32.mrf.mxu0
    %v949 = vadd.f32 %v812, %v948
    %950 = vdwg.mxu0
    %v951 = vld [vmem:[%s7] sm:$0x1]
    %v953 = vperm.slane %v951, 0
    %v955 = vadd.f32 %v872, %v953
    %v956 = vadd.f32 %v874, %v953
    %v957 = vadd.f32 %v877, %v953
    %v958 = vadd.f32 %v879, %v953
    %v959 = vadd.f32 %v882, %v953
    %v960 = vadd.f32 %v884, %v953
    %v961 = vadd.f32 %v887, %v953
    %v962 = vadd.f32 %v889, %v953
    %v963 = vadd.f32 %v892, %v953
    %v964 = vadd.f32 %v894, %v953
    %v965 = vadd.f32 %v897, %v953
    %v966 = vadd.f32 %v899, %v953
    %v967 = vadd.f32 %v902, %v953
    %v968 = vadd.f32 %v904, %v953
    %v969 = vadd.f32 %v907, %v953
    %v970 = vadd.f32 %v909, %v953
    %v971 = vadd.f32 %v912, %v953
    %v972 = vadd.f32 %v914, %v953
    %v973 = vadd.f32 %v917, %v953
    %v974 = vadd.f32 %v919, %v953
    %v975 = vadd.f32 %v922, %v953
    %v976 = vadd.f32 %v924, %v953
    %v977 = vadd.f32 %v927, %v953
    %v978 = vadd.f32 %v929, %v953
    %v979 = vadd.f32 %v932, %v953
    %v980 = vadd.f32 %v934, %v953
    %v981 = vadd.f32 %v937, %v953
    %v982 = vadd.f32 %v939, %v953
    %v983 = vadd.f32 %v942, %v953
    %v984 = vadd.f32 %v944, %v953
    %v985 = vadd.f32 %v947, %v953
    %v986 = vadd.f32 %v949, %v953
    %vm987 = vcmp.gt.f32.partialorder %v955, 0.0
    %vm988 = vcmp.gt.f32.partialorder %v956, 0.0
    %vm989 = vcmp.gt.f32.partialorder %v957, 0.0
    %vm990 = vcmp.gt.f32.partialorder %v958, 0.0
    %vm991 = vcmp.gt.f32.partialorder %v959, 0.0
    %vm992 = vcmp.gt.f32.partialorder %v960, 0.0
    %vm993 = vcmp.gt.f32.partialorder %v961, 0.0
    %vm994 = vcmp.gt.f32.partialorder %v962, 0.0
    %vm995 = vcmp.gt.f32.partialorder %v963, 0.0
    %vm996 = vcmp.gt.f32.partialorder %v964, 0.0
    %vm997 = vcmp.gt.f32.partialorder %v965, 0.0
    %vm998 = vcmp.gt.f32.partialorder %v966, 0.0
    %vm999 = vcmp.gt.f32.partialorder %v967, 0.0
    %vm1000 = vcmp.gt.f32.partialorder %v968, 0.0
    %vm1001 = vcmp.gt.f32.partialorder %v969, 0.0
    %vm1002 = vcmp.gt.f32.partialorder %v970, 0.0
    %vm1003 = vcmp.gt.f32.partialorder %v971, 0.0
    %vm1004 = vcmp.gt.f32.partialorder %v972, 0.0
    %vm1005 = vcmp.gt.f32.partialorder %v973, 0.0
    %vm1006 = vcmp.gt.f32.partialorder %v974, 0.0
    %vm1007 = vcmp.gt.f32.partialorder %v975, 0.0
    %vm1008 = vcmp.gt.f32.partialorder %v976, 0.0
    %vm1009 = vcmp.gt.f32.partialorder %v977, 0.0
    %vm1010 = vcmp.gt.f32.partialorder %v978, 0.0
    %vm1011 = vcmp.gt.f32.partialorder %v979, 0.0
    %vm1012 = vcmp.gt.f32.partialorder %v980, 0.0
    %vm1013 = vcmp.gt.f32.partialorder %v981, 0.0
    %vm1014 = vcmp.gt.f32.partialorder %v982, 0.0
    %vm1015 = vcmp.gt.f32.partialorder %v983, 0.0
    %vm1016 = vcmp.gt.f32.partialorder %v984, 0.0
    %vm1017 = vcmp.gt.f32.partialorder %v985, 0.0
    %vm1018 = vcmp.gt.f32.partialorder %v986, 0.0
    %v1019 = vmul.f32 %v955, 0.01
    %v1020 = vmul.f32 %v956, 0.01
    %v1021 = vmul.f32 %v957, 0.01
    %v1022 = vmul.f32 %v958, 0.01
    %v1023 = vmul.f32 %v959, 0.01
    %v1024 = vmul.f32 %v960, 0.01
    %v1025 = vmul.f32 %v961, 0.01
    %v1026 = vmul.f32 %v962, 0.01
    %v1027 = vmul.f32 %v963, 0.01
    %v1028 = vmul.f32 %v964, 0.01
    %v1029 = vmul.f32 %v965, 0.01
    %v1030 = vmul.f32 %v966, 0.01
    %v1031 = vmul.f32 %v967, 0.01
    %v1032 = vmul.f32 %v968, 0.01
    %v1033 = vmul.f32 %v969, 0.01
    %v1034 = vmul.f32 %v970, 0.01
    %v1035 = vmul.f32 %v971, 0.01
    %v1036 = vmul.f32 %v972, 0.01
    %v1037 = vmul.f32 %v973, 0.01
    %v1038 = vmul.f32 %v974, 0.01
    %v1039 = vmul.f32 %v975, 0.01
    %v1040 = vmul.f32 %v976, 0.01
    %v1041 = vmul.f32 %v977, 0.01
    %v1042 = vmul.f32 %v978, 0.01
    %v1043 = vmul.f32 %v979, 0.01
    %v1044 = vmul.f32 %v980, 0.01
    %v1045 = vmul.f32 %v981, 0.01
    %v1046 = vmul.f32 %v982, 0.01
    %v1047 = vmul.f32 %v983, 0.01
    %v1048 = vmul.f32 %v984, 0.01
    %v1049 = vmul.f32 %v985, 0.01
    %v1050 = vmul.f32 %v986, 0.01
    %v1051 = vsel %vm987, %v955, %v1019
    %v1052 = vsel %vm988, %v956, %v1020
    %v1053 = vsel %vm989, %v957, %v1021
    %v1054 = vsel %vm990, %v958, %v1022
    %v1055 = vsel %vm991, %v959, %v1023
    %v1056 = vsel %vm992, %v960, %v1024
    %v1057 = vsel %vm993, %v961, %v1025
    %v1058 = vsel %vm994, %v962, %v1026
    %v1059 = vsel %vm995, %v963, %v1027
    %v1060 = vsel %vm996, %v964, %v1028
    %v1061 = vsel %vm997, %v965, %v1029
    %v1062 = vsel %vm998, %v966, %v1030
    %v1063 = vsel %vm999, %v967, %v1031
    %v1064 = vsel %vm1000, %v968, %v1032
    %v1065 = vsel %vm1001, %v969, %v1033
    %v1066 = vsel %vm1002, %v970, %v1034
    %v1067 = vsel %vm1003, %v971, %v1035
    %v1068 = vsel %vm1004, %v972, %v1036
    %v1069 = vsel %vm1005, %v973, %v1037
    %v1070 = vsel %vm1006, %v974, %v1038
    %v1071 = vsel %vm1007, %v975, %v1039
    %v1072 = vsel %vm1008, %v976, %v1040
    %v1073 = vsel %vm1009, %v977, %v1041
    %v1074 = vsel %vm1010, %v978, %v1042
    %v1075 = vsel %vm1011, %v979, %v1043
    %v1076 = vsel %vm1012, %v980, %v1044
    %v1077 = vsel %vm1013, %v981, %v1045
    %v1078 = vsel %vm1014, %v982, %v1046
    %v1079 = vsel %vm1015, %v983, %v1047
    %v1080 = vsel %vm1016, %v984, %v1048
    %v1081 = vsel %vm1017, %v985, %v1049
    %v1082 = vsel %vm1018, %v986, %v1050
    %1084 = vset.pattern.permute.xlu0 0
    %1085 = vperm.xlu0 %1084, %v131
    %v1086 = vpop.permute.xlu0 %1085
    %1089 = vset.pattern.permute.xlu0 0
    %1090 = vperm.xlu0 %1089, %v132
    %v1091 = vpop.permute.xlu0 %1090
    %1094 = vset.pattern.permute.xlu0 0
    %1095 = vperm.xlu0 %1094, %v133
    %v1096 = vpop.permute.xlu0 %1095
    %1099 = vset.pattern.permute.xlu0 0
    %1100 = vperm.xlu0 %1099, %v134
    %v1101 = vpop.permute.xlu0 %1100
    %1104 = vset.pattern.permute.xlu0 0
    %1105 = vperm.xlu0 %1104, %v135
    %v1106 = vpop.permute.xlu0 %1105
    %1109 = vset.pattern.permute.xlu0 0
    %1110 = vperm.xlu0 %1109, %v136
    %v1111 = vpop.permute.xlu0 %1110
    %1114 = vset.pattern.permute.xlu0 0
    %1115 = vperm.xlu0 %1114, %v137
    %v1116 = vpop.permute.xlu0 %1115
    %1119 = vset.pattern.permute.xlu0 0
    %1120 = vperm.xlu0 %1119, %v138
    %v1121 = vpop.permute.xlu0 %1120
    %1124 = vset.pattern.permute.xlu0 0
    %1125 = vperm.xlu0 %1124, %v139
    %v1126 = vpop.permute.xlu0 %1125
    %1129 = vset.pattern.permute.xlu0 0
    %1130 = vperm.xlu0 %1129, %v140
    %v1131 = vpop.permute.xlu0 %1130
    %1134 = vset.pattern.permute.xlu0 0
    %1135 = vperm.xlu0 %1134, %v141
    %v1136 = vpop.permute.xlu0 %1135
    %1139 = vset.pattern.permute.xlu0 0
    %1140 = vperm.xlu0 %1139, %v142
    %v1141 = vpop.permute.xlu0 %1140
    %1144 = vset.pattern.permute.xlu0 0
    %1145 = vperm.xlu0 %1144, %v143
    %v1146 = vpop.permute.xlu0 %1145
    %1149 = vset.pattern.permute.xlu0 0
    %1150 = vperm.xlu0 %1149, %v144
    %v1151 = vpop.permute.xlu0 %1150
    %1154 = vset.pattern.permute.xlu0 0
    %1155 = vperm.xlu0 %1154, %v145
    %v1156 = vpop.permute.xlu0 %1155
    %1159 = vset.pattern.permute.xlu0 0
    %1160 = vperm.xlu0 %1159, %v146
    %v1161 = vpop.permute.xlu0 %1160
    %1164 = vset.pattern.permute.xlu0 0
    %1165 = vperm.xlu0 %1164, %v147
    %v1166 = vpop.permute.xlu0 %1165
    %1169 = vset.pattern.permute.xlu0 0
    %1170 = vperm.xlu0 %1169, %v148
    %v1171 = vpop.permute.xlu0 %1170
    %1174 = vset.pattern.permute.xlu0 0
    %1175 = vperm.xlu0 %1174, %v149
    %v1176 = vpop.permute.xlu0 %1175
    %1179 = vset.pattern.permute.xlu0 0
    %1180 = vperm.xlu0 %1179, %v150
    %v1181 = vpop.permute.xlu0 %1180
    %1184 = vset.pattern.permute.xlu0 0
    %1185 = vperm.xlu0 %1184, %v151
    %v1186 = vpop.permute.xlu0 %1185
    %1189 = vset.pattern.permute.xlu0 0
    %1190 = vperm.xlu0 %1189, %v152
    %v1191 = vpop.permute.xlu0 %1190
    %1194 = vset.pattern.permute.xlu0 0
    %1195 = vperm.xlu0 %1194, %v153
    %v1196 = vpop.permute.xlu0 %1195
    %1199 = vset.pattern.permute.xlu0 0
    %1200 = vperm.xlu0 %1199, %v154
    %v1201 = vpop.permute.xlu0 %1200
    %1204 = vset.pattern.permute.xlu0 0
    %1205 = vperm.xlu0 %1204, %v155
    %v1206 = vpop.permute.xlu0 %1205
    %1209 = vset.pattern.permute.xlu0 0
    %1210 = vperm.xlu0 %1209, %v156
    %v1211 = vpop.permute.xlu0 %1210
    %1214 = vset.pattern.permute.xlu0 0
    %1215 = vperm.xlu0 %1214, %v157
    %v1216 = vpop.permute.xlu0 %1215
    %1219 = vset.pattern.permute.xlu0 0
    %1220 = vperm.xlu0 %1219, %v158
    %v1221 = vpop.permute.xlu0 %1220
    %1224 = vset.pattern.permute.xlu0 0
    %1225 = vperm.xlu0 %1224, %v159
    %v1226 = vpop.permute.xlu0 %1225
    %1229 = vset.pattern.permute.xlu0 0
    %1230 = vperm.xlu0 %1229, %v160
    %v1231 = vpop.permute.xlu0 %1230
    %1234 = vset.pattern.permute.xlu0 0
    %1235 = vperm.xlu0 %1234, %v161
    %v1236 = vpop.permute.xlu0 %1235
    %1239 = vset.pattern.permute.xlu0 0
    %1240 = vperm.xlu0 %1239, %v162
    %v1241 = vpop.permute.xlu0 %1240
    %v1243 = vmul.f32 %v1051, %v1086
    %v1244 = vmul.f32 %v1052, %v1091
    %v1245 = vmul.f32 %v1053, %v1096
    %v1246 = vmul.f32 %v1054, %v1101
    %v1247 = vmul.f32 %v1055, %v1106
    %v1248 = vmul.f32 %v1056, %v1111
    %v1249 = vmul.f32 %v1057, %v1116
    %v1250 = vmul.f32 %v1058, %v1121
    %v1251 = vmul.f32 %v1059, %v1126
    %v1252 = vmul.f32 %v1060, %v1131
    %v1253 = vmul.f32 %v1061, %v1136
    %v1254 = vmul.f32 %v1062, %v1141
    %v1255 = vmul.f32 %v1063, %v1146
    %v1256 = vmul.f32 %v1064, %v1151
    %v1257 = vmul.f32 %v1065, %v1156
    %v1258 = vmul.f32 %v1066, %v1161
    %v1259 = vmul.f32 %v1067, %v1166
    %v1260 = vmul.f32 %v1068, %v1171
    %v1261 = vmul.f32 %v1069, %v1176
    %v1262 = vmul.f32 %v1070, %v1181
    %v1263 = vmul.f32 %v1071, %v1186
    %v1264 = vmul.f32 %v1072, %v1191
    %v1265 = vmul.f32 %v1073, %v1196
    %v1266 = vmul.f32 %v1074, %v1201
    %v1267 = vmul.f32 %v1075, %v1206
    %v1268 = vmul.f32 %v1076, %v1211
    %v1269 = vmul.f32 %v1077, %v1216
    %v1270 = vmul.f32 %v1078, %v1221
    %v1271 = vmul.f32 %v1079, %v1226
    %v1272 = vmul.f32 %v1080, %v1231
    %v1273 = vmul.f32 %v1081, %v1236
    %v1274 = vmul.f32 %v1082, %v1241
    %v1275 = vpack.c.bf16 %v1244, %v1243
    %v1276 = vpack.c.bf16 %v1246, %v1245
    %v1277 = vpack.c.bf16 %v1248, %v1247
    %v1278 = vpack.c.bf16 %v1250, %v1249
    %v1279 = vpack.c.bf16 %v1252, %v1251
    %v1280 = vpack.c.bf16 %v1254, %v1253
    %v1281 = vpack.c.bf16 %v1256, %v1255
    %v1282 = vpack.c.bf16 %v1258, %v1257
    %v1283 = vpack.c.bf16 %v1260, %v1259
    %v1284 = vpack.c.bf16 %v1262, %v1261
    %v1285 = vpack.c.bf16 %v1264, %v1263
    %v1286 = vpack.c.bf16 %v1266, %v1265
    %v1287 = vpack.c.bf16 %v1268, %v1267
    %v1288 = vpack.c.bf16 %v1270, %v1269
    %v1289 = vpack.c.bf16 %v1272, %v1271
    %v1290 = vpack.c.bf16 %v1274, %v1273
    %1291 = vmatpush.bf16.msra.mxu0 %v1282
    %1292 = vmatpush.bf16.msra.mxu0 %v1281
    %1293 = vmatpush.bf16.msra.mxu0 %v1280
    %1294 = vmatpush.bf16.msra.mxu0 %v1279
    %1295 = vmatpush.bf16.msra.mxu0 %v1278
    %1296 = vmatpush.bf16.msra.mxu0 %v1277
    %1297 = vmatpush.bf16.msra.mxu0 %v1276
    %1298 = vmatpush.bf16.msra.mxu0 %v1275
    %1299 = vmatmul.bf16.gmra.mxu0 %v291
    %v1300 = vpop.f32.mrf.mxu0
    %v1301 = vadd.f32 0.0, %v1300
    %v1302 = vpop.f32.mrf.mxu0
    %v1303 = vadd.f32 0.0, %v1302
    %1304 = vmatmul.bf16.gmra.mxu0 %v293
    %v1305 = vpop.f32.mrf.mxu0
    %v1306 = vadd.f32 0.0, %v1305
    %v1307 = vpop.f32.mrf.mxu0
    %v1308 = vadd.f32 0.0, %v1307
    %1309 = vmatmul.bf16.gmra.mxu0 %v295
    %v1310 = vpop.f32.mrf.mxu0
    %v1311 = vadd.f32 0.0, %v1310
    %v1312 = vpop.f32.mrf.mxu0
    %v1313 = vadd.f32 0.0, %v1312
    %1314 = vmatmul.bf16.gmra.mxu0 %v297
    %v1315 = vpop.f32.mrf.mxu0
    %v1316 = vadd.f32 0.0, %v1315
    %v1317 = vpop.f32.mrf.mxu0
    %v1318 = vadd.f32 0.0, %v1317
    %1319 = vmatmul.bf16.gmra.mxu0 %v299
    %v1320 = vpop.f32.mrf.mxu0
    %v1321 = vadd.f32 0.0, %v1320
    %v1322 = vpop.f32.mrf.mxu0
    %v1323 = vadd.f32 0.0, %v1322
    %1324 = vmatmul.bf16.gmra.mxu0 %v301
    %v1325 = vpop.f32.mrf.mxu0
    %v1326 = vadd.f32 0.0, %v1325
    %v1327 = vpop.f32.mrf.mxu0
    %v1328 = vadd.f32 0.0, %v1327
    %1329 = vmatmul.bf16.gmra.mxu0 %v303
    %v1330 = vpop.f32.mrf.mxu0
    %v1331 = vadd.f32 0.0, %v1330
    %v1332 = vpop.f32.mrf.mxu0
    %v1333 = vadd.f32 0.0, %v1332
    %1334 = vmatmul.bf16.gmra.mxu0 %v305
    %v1335 = vpop.f32.mrf.mxu0
    %v1336 = vadd.f32 0.0, %v1335
    %v1337 = vpop.f32.mrf.mxu0
    %v1338 = vadd.f32 0.0, %v1337
    %1339 = vmatmul.bf16.gmra.mxu0 %v307
    %v1340 = vpop.f32.mrf.mxu0
    %v1341 = vadd.f32 0.0, %v1340
    %v1342 = vpop.f32.mrf.mxu0
    %v1343 = vadd.f32 0.0, %v1342
    %1344 = vmatmul.bf16.gmra.mxu0 %v309
    %v1345 = vpop.f32.mrf.mxu0
    %v1346 = vadd.f32 0.0, %v1345
    %v1347 = vpop.f32.mrf.mxu0
    %v1348 = vadd.f32 0.0, %v1347
    %1349 = vmatmul.bf16.gmra.mxu0 %v311
    %v1350 = vpop.f32.mrf.mxu0
    %v1351 = vadd.f32 0.0, %v1350
    %v1352 = vpop.f32.mrf.mxu0
    %v1353 = vadd.f32 0.0, %v1352
    %1354 = vmatmul.bf16.gmra.mxu0 %v313
    %v1355 = vpop.f32.mrf.mxu0
    %v1356 = vadd.f32 0.0, %v1355
    %v1357 = vpop.f32.mrf.mxu0
    %v1358 = vadd.f32 0.0, %v1357
    %1359 = vmatmul.bf16.gmra.mxu0 %v315
    %v1360 = vpop.f32.mrf.mxu0
    %v1361 = vadd.f32 0.0, %v1360
    %v1362 = vpop.f32.mrf.mxu0
    %v1363 = vadd.f32 0.0, %v1362
    %1364 = vmatmul.bf16.gmra.mxu0 %v317
    %v1365 = vpop.f32.mrf.mxu0
    %v1366 = vadd.f32 0.0, %v1365
    %v1367 = vpop.f32.mrf.mxu0
    %v1368 = vadd.f32 0.0, %v1367
    %1369 = vmatmul.bf16.gmra.mxu0 %v319
    %v1370 = vpop.f32.mrf.mxu0
    %v1371 = vadd.f32 0.0, %v1370
    %v1372 = vpop.f32.mrf.mxu0
    %v1373 = vadd.f32 0.0, %v1372
    %1374 = vmatmul.bf16.gmra.mxu0 %v321
    %v1375 = vpop.f32.mrf.mxu0
    %v1376 = vadd.f32 0.0, %v1375
    %v1377 = vpop.f32.mrf.mxu0
    %v1378 = vadd.f32 0.0, %v1377
    %1379 = vdwg.mxu0
    %1380 = vmatpush.bf16.msra.mxu0 %v1290
    %1381 = vmatpush.bf16.msra.mxu0 %v1289
    %1382 = vmatpush.bf16.msra.mxu0 %v1288
    %1383 = vmatpush.bf16.msra.mxu0 %v1287
    %1384 = vmatpush.bf16.msra.mxu0 %v1286
    %1385 = vmatpush.bf16.msra.mxu0 %v1285
    %1386 = vmatpush.bf16.msra.mxu0 %v1284
    %1387 = vmatpush.bf16.msra.mxu0 %v1283
    %1388 = vmatmul.bf16.gmra.mxu0 %v292
    %v1389 = vpop.f32.mrf.mxu0
    %v1390 = vadd.f32 %v1301, %v1389
    %v1391 = vpop.f32.mrf.mxu0
    %v1392 = vadd.f32 %v1303, %v1391
    %1393 = vmatmul.bf16.gmra.mxu0 %v294
    %v1394 = vpop.f32.mrf.mxu0
    %v1395 = vadd.f32 %v1306, %v1394
    %v1396 = vpop.f32.mrf.mxu0
    %v1397 = vadd.f32 %v1308, %v1396
    %1398 = vmatmul.bf16.gmra.mxu0 %v296
    %v1399 = vpop.f32.mrf.mxu0
    %v1400 = vadd.f32 %v1311, %v1399
    %v1401 = vpop.f32.mrf.mxu0
    %v1402 = vadd.f32 %v1313, %v1401
    %1403 = vmatmul.bf16.gmra.mxu0 %v298
    %v1404 = vpop.f32.mrf.mxu0
    %v1405 = vadd.f32 %v1316, %v1404
    %v1406 = vpop.f32.mrf.mxu0
    %v1407 = vadd.f32 %v1318, %v1406
    %1408 = vmatmul.bf16.gmra.mxu0 %v300
    %v1409 = vpop.f32.mrf.mxu0
    %v1410 = vadd.f32 %v1321, %v1409
    %v1411 = vpop.f32.mrf.mxu0
    %v1412 = vadd.f32 %v1323, %v1411
    %1413 = vmatmul.bf16.gmra.mxu0 %v302
    %v1414 = vpop.f32.mrf.mxu0
    %v1415 = vadd.f32 %v1326, %v1414
    %v1416 = vpop.f32.mrf.mxu0
    %v1417 = vadd.f32 %v1328, %v1416
    %1418 = vmatmul.bf16.gmra.mxu0 %v304
    %v1419 = vpop.f32.mrf.mxu0
    %v1420 = vadd.f32 %v1331, %v1419
    %v1421 = vpop.f32.mrf.mxu0
    %v1422 = vadd.f32 %v1333, %v1421
    %1423 = vmatmul.bf16.gmra.mxu0 %v306
    %v1424 = vpop.f32.mrf.mxu0
    %v1425 = vadd.f32 %v1336, %v1424
    %v1426 = vpop.f32.mrf.mxu0
    %v1427 = vadd.f32 %v1338, %v1426
    %1428 = vmatmul.bf16.gmra.mxu0 %v308
    %v1429 = vpop.f32.mrf.mxu0
    %v1430 = vadd.f32 %v1341, %v1429
    %v1431 = vpop.f32.mrf.mxu0
    %v1432 = vadd.f32 %v1343, %v1431
    %1433 = vmatmul.bf16.gmra.mxu0 %v310
    %v1434 = vpop.f32.mrf.mxu0
    %v1435 = vadd.f32 %v1346, %v1434
    %v1436 = vpop.f32.mrf.mxu0
    %v1437 = vadd.f32 %v1348, %v1436
    %1438 = vmatmul.bf16.gmra.mxu0 %v312
    %v1439 = vpop.f32.mrf.mxu0
    %v1440 = vadd.f32 %v1351, %v1439
    %v1441 = vpop.f32.mrf.mxu0
    %v1442 = vadd.f32 %v1353, %v1441
    %1443 = vmatmul.bf16.gmra.mxu0 %v314
    %v1444 = vpop.f32.mrf.mxu0
    %v1445 = vadd.f32 %v1356, %v1444
    %v1446 = vpop.f32.mrf.mxu0
    %v1447 = vadd.f32 %v1358, %v1446
    %1448 = vmatmul.bf16.gmra.mxu0 %v316
    %v1449 = vpop.f32.mrf.mxu0
    %v1450 = vadd.f32 %v1361, %v1449
    %v1451 = vpop.f32.mrf.mxu0
    %v1452 = vadd.f32 %v1363, %v1451
    %1453 = vmatmul.bf16.gmra.mxu0 %v318
    %v1454 = vpop.f32.mrf.mxu0
    %v1455 = vadd.f32 %v1366, %v1454
    %v1456 = vpop.f32.mrf.mxu0
    %v1457 = vadd.f32 %v1368, %v1456
    %1458 = vmatmul.bf16.gmra.mxu0 %v320
    %v1459 = vpop.f32.mrf.mxu0
    %v1460 = vadd.f32 %v1371, %v1459
    %v1461 = vpop.f32.mrf.mxu0
    %v1462 = vadd.f32 %v1373, %v1461
    %1463 = vmatmul.bf16.gmra.mxu0 %v322
    %v1464 = vpop.f32.mrf.mxu0
    %v1465 = vadd.f32 %v1376, %v1464
    %v1466 = vpop.f32.mrf.mxu0
    %v1467 = vadd.f32 %v1378, %v1466
    %1468 = vdwg.mxu0
    %v1469 = vpack.c.bf16 %v1392, %v1390
    %v1470 = vpack.c.bf16 %v1397, %v1395
    %v1471 = vpack.c.bf16 %v1402, %v1400
    %v1472 = vpack.c.bf16 %v1407, %v1405
    %v1473 = vpack.c.bf16 %v1412, %v1410
    %v1474 = vpack.c.bf16 %v1417, %v1415
    %v1475 = vpack.c.bf16 %v1422, %v1420
    %v1476 = vpack.c.bf16 %v1427, %v1425
    %v1477 = vpack.c.bf16 %v1432, %v1430
    %v1478 = vpack.c.bf16 %v1437, %v1435
    %v1479 = vpack.c.bf16 %v1442, %v1440
    %v1480 = vpack.c.bf16 %v1447, %v1445
    %v1481 = vpack.c.bf16 %v1452, %v1450
    %v1482 = vpack.c.bf16 %v1457, %v1455
    %v1483 = vpack.c.bf16 %v1462, %v1460
    %v1484 = vpack.c.bf16 %v1467, %v1465
    %s1485 = scalar_lea.vmem [#allocation5], 64
    %v1486 = vld [vmem:[%s1485] sm:$0xf]
    %v1487 = vld [vmem:[%s1485 + $0x4] sm:$0xf]
    %v1488 = vld [vmem:[%s1485 + $0x8] sm:$0xf]
    %v1489 = vld [vmem:[%s1485 + $0xc] sm:$0xf]
    %v1490 = vld [vmem:[%s1485 + $0x10] sm:$0xf]
    %v1491 = vld [vmem:[%s1485 + $0x14] sm:$0xf]
    %v1492 = vld [vmem:[%s1485 + $0x18] sm:$0xf]
    %v1493 = vld [vmem:[%s1485 + $0x1c] sm:$0xf]
    %v1494 = vld [vmem:[%s1485 + $0x20] sm:$0xf]
    %v1495 = vld [vmem:[%s1485 + $0x24] sm:$0xf]
    %v1496 = vld [vmem:[%s1485 + $0x28] sm:$0xf]
    %v1497 = vld [vmem:[%s1485 + $0x2c] sm:$0xf]
    %v1498 = vld [vmem:[%s1485 + $0x30] sm:$0xf]
    %v1499 = vld [vmem:[%s1485 + $0x34] sm:$0xf]
    %v1500 = vld [vmem:[%s1485 + $0x38] sm:$0xf]
    %v1501 = vld [vmem:[%s1485 + $0x3c] sm:$0xf]
    %s1502 = scalar_lea.vmem [#allocation7], 64
    %v1503 = vld [vmem:[%s1502] sm:$0xf]
    %v1504 = vld [vmem:[%s1502 + $0x4] sm:$0xf]
    %v1505 = vld [vmem:[%s1502 + $0x8] sm:$0xf]
    %v1506 = vld [vmem:[%s1502 + $0xc] sm:$0xf]
    %v1507 = vld [vmem:[%s1502 + $0x10] sm:$0xf]
    %v1508 = vld [vmem:[%s1502 + $0x14] sm:$0xf]
    %v1509 = vld [vmem:[%s1502 + $0x18] sm:$0xf]
    %v1510 = vld [vmem:[%s1502 + $0x1c] sm:$0xf]
    %v1511 = vld [vmem:[%s1502 + $0x20] sm:$0xf]
    %v1512 = vld [vmem:[%s1502 + $0x24] sm:$0xf]
    %v1513 = vld [vmem:[%s1502 + $0x28] sm:$0xf]
    %v1514 = vld [vmem:[%s1502 + $0x2c] sm:$0xf]
    %v1515 = vld [vmem:[%s1502 + $0x30] sm:$0xf]
    %v1516 = vld [vmem:[%s1502 + $0x34] sm:$0xf]
    %v1517 = vld [vmem:[%s1502 + $0x38] sm:$0xf]
    %v1518 = vld [vmem:[%s1502 + $0x3c] sm:$0xf]
    %v1535 = vunpack.c.l.b16 %v1503
    %v1536 = vunpack.c.l.b16 %v1504
    %v1537 = vunpack.c.l.b16 %v1505
    %v1538 = vunpack.c.l.b16 %v1506
    %v1539 = vunpack.c.l.b16 %v1507
    %v1540 = vunpack.c.l.b16 %v1508
    %v1541 = vunpack.c.l.b16 %v1509
    %v1542 = vunpack.c.l.b16 %v1510
    %v1543 = vunpack.c.l.b16 %v1511
    %v1544 = vunpack.c.l.b16 %v1512
    %v1545 = vunpack.c.l.b16 %v1513
    %v1546 = vunpack.c.l.b16 %v1514
    %v1547 = vunpack.c.l.b16 %v1515
    %v1548 = vunpack.c.l.b16 %v1516
    %v1549 = vunpack.c.l.b16 %v1517
    %v1550 = vunpack.c.l.b16 %v1518
    %v1551 = vpack.c.b16 %v1536, %v1535
    %v1552 = vpack.c.b16 %v1538, %v1537
    %v1553 = vpack.c.b16 %v1540, %v1539
    %v1554 = vpack.c.b16 %v1542, %v1541
    %v1555 = vpack.c.b16 %v1544, %v1543
    %v1556 = vpack.c.b16 %v1546, %v1545
    %v1557 = vpack.c.b16 %v1548, %v1547
    %v1558 = vpack.c.b16 %v1550, %v1549
    %1567 = vmatpush.bf16.msra.mxu0 %v1558
    %1568 = vmatpush.bf16.msra.mxu0 %v1557
    %1569 = vmatpush.bf16.msra.mxu0 %v1556
    %1570 = vmatpush.bf16.msra.mxu0 %v1555
    %1571 = vmatpush.bf16.msra.mxu0 %v1554
    %1572 = vmatpush.bf16.msra.mxu0 %v1553
    %1573 = vmatpush.bf16.msra.mxu0 %v1552
    %1574 = vmatpush.bf16.msra.mxu0 %v1551
    %1575 = vmatmul.bf16.gmra.mxu0 %v1275
    %v1576 = vpop.f32.mrf.mxu0
    %v1577 = vadd.f32 0.0, %v1576
    %v1578 = vpop.f32.mrf.mxu0
    %v1579 = vadd.f32 0.0, %v1578
    %1580 = vmatmul.bf16.gmra.mxu0 %v1276
    %v1581 = vpop.f32.mrf.mxu0
    %v1582 = vadd.f32 0.0, %v1581
    %v1583 = vpop.f32.mrf.mxu0
    %v1584 = vadd.f32 0.0, %v1583
    %1585 = vmatmul.bf16.gmra.mxu0 %v1277
    %v1586 = vpop.f32.mrf.mxu0
    %v1587 = vadd.f32 0.0, %v1586
    %v1588 = vpop.f32.mrf.mxu0
    %v1589 = vadd.f32 0.0, %v1588
    %1590 = vmatmul.bf16.gmra.mxu0 %v1278
    %v1591 = vpop.f32.mrf.mxu0
    %v1592 = vadd.f32 0.0, %v1591
    %v1593 = vpop.f32.mrf.mxu0
    %v1594 = vadd.f32 0.0, %v1593
    %1595 = vmatmul.bf16.gmra.mxu0 %v1279
    %v1596 = vpop.f32.mrf.mxu0
    %v1597 = vadd.f32 0.0, %v1596
    %v1598 = vpop.f32.mrf.mxu0
    %v1599 = vadd.f32 0.0, %v1598
    %1600 = vmatmul.bf16.gmra.mxu0 %v1280
    %v1601 = vpop.f32.mrf.mxu0
    %v1602 = vadd.f32 0.0, %v1601
    %v1603 = vpop.f32.mrf.mxu0
    %v1604 = vadd.f32 0.0, %v1603
    %1605 = vmatmul.bf16.gmra.mxu0 %v1281
    %v1606 = vpop.f32.mrf.mxu0
    %v1607 = vadd.f32 0.0, %v1606
    %v1608 = vpop.f32.mrf.mxu0
    %v1609 = vadd.f32 0.0, %v1608
    %1610 = vmatmul.bf16.gmra.mxu0 %v1282
    %v1611 = vpop.f32.mrf.mxu0
    %v1612 = vadd.f32 0.0, %v1611
    %v1613 = vpop.f32.mrf.mxu0
    %v1614 = vadd.f32 0.0, %v1613
    %1615 = vmatmul.bf16.gmra.mxu0 %v1283
    %v1616 = vpop.f32.mrf.mxu0
    %v1617 = vadd.f32 0.0, %v1616
    %v1618 = vpop.f32.mrf.mxu0
    %v1619 = vadd.f32 0.0, %v1618
    %1620 = vmatmul.bf16.gmra.mxu0 %v1284
    %v1621 = vpop.f32.mrf.mxu0
    %v1622 = vadd.f32 0.0, %v1621
    %v1623 = vpop.f32.mrf.mxu0
    %v1624 = vadd.f32 0.0, %v1623
    %1625 = vmatmul.bf16.gmra.mxu0 %v1285
    %v1626 = vpop.f32.mrf.mxu0
    %v1627 = vadd.f32 0.0, %v1626
    %v1628 = vpop.f32.mrf.mxu0
    %v1629 = vadd.f32 0.0, %v1628
    %1630 = vmatmul.bf16.gmra.mxu0 %v1286
    %v1631 = vpop.f32.mrf.mxu0
    %v1632 = vadd.f32 0.0, %v1631
    %v1633 = vpop.f32.mrf.mxu0
    %v1634 = vadd.f32 0.0, %v1633
    %1635 = vmatmul.bf16.gmra.mxu0 %v1287
    %v1636 = vpop.f32.mrf.mxu0
    %v1637 = vadd.f32 0.0, %v1636
    %v1638 = vpop.f32.mrf.mxu0
    %v1639 = vadd.f32 0.0, %v1638
    %1640 = vmatmul.bf16.gmra.mxu0 %v1288
    %v1641 = vpop.f32.mrf.mxu0
    %v1642 = vadd.f32 0.0, %v1641
    %v1643 = vpop.f32.mrf.mxu0
    %v1644 = vadd.f32 0.0, %v1643
    %1645 = vmatmul.bf16.gmra.mxu0 %v1289
    %v1646 = vpop.f32.mrf.mxu0
    %v1647 = vadd.f32 0.0, %v1646
    %v1648 = vpop.f32.mrf.mxu0
    %v1649 = vadd.f32 0.0, %v1648
    %1650 = vmatmul.bf16.gmra.mxu0 %v1290
    %v1651 = vpop.f32.mrf.mxu0
    %v1652 = vadd.f32 0.0, %v1651
    %v1653 = vpop.f32.mrf.mxu0
    %v1654 = vadd.f32 0.0, %v1653
    %1655 = vdwg.mxu0
    %v1672 = vunpack.c.l.b16 %v1486
    %v1673 = vunpack.c.l.b16 %v1487
    %v1674 = vunpack.c.l.b16 %v1488
    %v1675 = vunpack.c.l.b16 %v1489
    %v1676 = vunpack.c.l.b16 %v1490
    %v1677 = vunpack.c.l.b16 %v1491
    %v1678 = vunpack.c.l.b16 %v1492
    %v1679 = vunpack.c.l.b16 %v1493
    %v1680 = vunpack.c.l.b16 %v1494
    %v1681 = vunpack.c.l.b16 %v1495
    %v1682 = vunpack.c.l.b16 %v1496
    %v1683 = vunpack.c.l.b16 %v1497
    %v1684 = vunpack.c.l.b16 %v1498
    %v1685 = vunpack.c.l.b16 %v1499
    %v1686 = vunpack.c.l.b16 %v1500
    %v1687 = vunpack.c.l.b16 %v1501
    %v1688 = vpack.c.b16 %v1673, %v1672
    %v1689 = vpack.c.b16 %v1675, %v1674
    %v1690 = vpack.c.b16 %v1677, %v1676
    %v1691 = vpack.c.b16 %v1679, %v1678
    %v1692 = vpack.c.b16 %v1681, %v1680
    %v1693 = vpack.c.b16 %v1683, %v1682
    %v1694 = vpack.c.b16 %v1685, %v1684
    %v1695 = vpack.c.b16 %v1687, %v1686
    %1704 = vmatpush.bf16.msra.mxu0 %v1695
    %1705 = vmatpush.bf16.msra.mxu0 %v1694
    %1706 = vmatpush.bf16.msra.mxu0 %v1693
    %1707 = vmatpush.bf16.msra.mxu0 %v1692
    %1708 = vmatpush.bf16.msra.mxu0 %v1691
    %1709 = vmatpush.bf16.msra.mxu0 %v1690
    %1710 = vmatpush.bf16.msra.mxu0 %v1689
    %1711 = vmatpush.bf16.msra.mxu0 %v1688
    %1712 = vmatmul.bf16.gmra.mxu0 %v1469
    %v1713 = vpop.f32.mrf.mxu0
    %v1714 = vadd.f32 %v1577, %v1713
    %v1715 = vpop.f32.mrf.mxu0
    %v1716 = vadd.f32 %v1579, %v1715
    %1717 = vmatmul.bf16.gmra.mxu0 %v1470
    %v1718 = vpop.f32.mrf.mxu0
    %v1719 = vadd.f32 %v1582, %v1718
    %v1720 = vpop.f32.mrf.mxu0
    %v1721 = vadd.f32 %v1584, %v1720
    %1722 = vmatmul.bf16.gmra.mxu0 %v1471
    %v1723 = vpop.f32.mrf.mxu0
    %v1724 = vadd.f32 %v1587, %v1723
    %v1725 = vpop.f32.mrf.mxu0
    %v1726 = vadd.f32 %v1589, %v1725
    %1727 = vmatmul.bf16.gmra.mxu0 %v1472
    %v1728 = vpop.f32.mrf.mxu0
    %v1729 = vadd.f32 %v1592, %v1728
    %v1730 = vpop.f32.mrf.mxu0
    %v1731 = vadd.f32 %v1594, %v1730
    %1732 = vmatmul.bf16.gmra.mxu0 %v1473
    %v1733 = vpop.f32.mrf.mxu0
    %v1734 = vadd.f32 %v1597, %v1733
    %v1735 = vpop.f32.mrf.mxu0
    %v1736 = vadd.f32 %v1599, %v1735
    %1737 = vmatmul.bf16.gmra.mxu0 %v1474
    %v1738 = vpop.f32.mrf.mxu0
    %v1739 = vadd.f32 %v1602, %v1738
    %v1740 = vpop.f32.mrf.mxu0
    %v1741 = vadd.f32 %v1604, %v1740
    %1742 = vmatmul.bf16.gmra.mxu0 %v1475
    %v1743 = vpop.f32.mrf.mxu0
    %v1744 = vadd.f32 %v1607, %v1743
    %v1745 = vpop.f32.mrf.mxu0
    %v1746 = vadd.f32 %v1609, %v1745
    %1747 = vmatmul.bf16.gmra.mxu0 %v1476
    %v1748 = vpop.f32.mrf.mxu0
    %v1749 = vadd.f32 %v1612, %v1748
    %v1750 = vpop.f32.mrf.mxu0
    %v1751 = vadd.f32 %v1614, %v1750
    %1752 = vmatmul.bf16.gmra.mxu0 %v1477
    %v1753 = vpop.f32.mrf.mxu0
    %v1754 = vadd.f32 %v1617, %v1753
    %v1755 = vpop.f32.mrf.mxu0
    %v1756 = vadd.f32 %v1619, %v1755
    %1757 = vmatmul.bf16.gmra.mxu0 %v1478
    %v1758 = vpop.f32.mrf.mxu0
    %v1759 = vadd.f32 %v1622, %v1758
    %v1760 = vpop.f32.mrf.mxu0
    %v1761 = vadd.f32 %v1624, %v1760
    %1762 = vmatmul.bf16.gmra.mxu0 %v1479
    %v1763 = vpop.f32.mrf.mxu0
    %v1764 = vadd.f32 %v1627, %v1763
    %v1765 = vpop.f32.mrf.mxu0
    %v1766 = vadd.f32 %v1629, %v1765
    %1767 = vmatmul.bf16.gmra.mxu0 %v1480
    %v1768 = vpop.f32.mrf.mxu0
    %v1769 = vadd.f32 %v1632, %v1768
    %v1770 = vpop.f32.mrf.mxu0
    %v1771 = vadd.f32 %v1634, %v1770
    %1772 = vmatmul.bf16.gmra.mxu0 %v1481
    %v1773 = vpop.f32.mrf.mxu0
    %v1774 = vadd.f32 %v1637, %v1773
    %v1775 = vpop.f32.mrf.mxu0
    %v1776 = vadd.f32 %v1639, %v1775
    %1777 = vmatmul.bf16.gmra.mxu0 %v1482
    %v1778 = vpop.f32.mrf.mxu0
    %v1779 = vadd.f32 %v1642, %v1778
    %v1780 = vpop.f32.mrf.mxu0
    %v1781 = vadd.f32 %v1644, %v1780
    %1782 = vmatmul.bf16.gmra.mxu0 %v1483
    %v1783 = vpop.f32.mrf.mxu0
    %v1784 = vadd.f32 %v1647, %v1783
    %v1785 = vpop.f32.mrf.mxu0
    %v1786 = vadd.f32 %v1649, %v1785
    %1787 = vmatmul.bf16.gmra.mxu0 %v1484
    %v1788 = vpop.f32.mrf.mxu0
    %v1789 = vadd.f32 %v1652, %v1788
    %v1790 = vpop.f32.mrf.mxu0
    %v1791 = vadd.f32 %v1654, %v1790
    %1792 = vdwg.mxu0
    %s1793 = scalar_lea.vmem %s7, 1
    %v1794 = vld [vmem:[%s1793] sm:$0x1]
    %v1796 = vperm.slane %v1794, 0
    %v1798 = vadd.f32 %v1714, %v1796
    %v1799 = vadd.f32 %v1716, %v1796
    %v1800 = vadd.f32 %v1719, %v1796
    %v1801 = vadd.f32 %v1721, %v1796
    %v1802 = vadd.f32 %v1724, %v1796
    %v1803 = vadd.f32 %v1726, %v1796
    %v1804 = vadd.f32 %v1729, %v1796
    %v1805 = vadd.f32 %v1731, %v1796
    %v1806 = vadd.f32 %v1734, %v1796
    %v1807 = vadd.f32 %v1736, %v1796
    %v1808 = vadd.f32 %v1739, %v1796
    %v1809 = vadd.f32 %v1741, %v1796
    %v1810 = vadd.f32 %v1744, %v1796
    %v1811 = vadd.f32 %v1746, %v1796
    %v1812 = vadd.f32 %v1749, %v1796
    %v1813 = vadd.f32 %v1751, %v1796
    %v1814 = vadd.f32 %v1754, %v1796
    %v1815 = vadd.f32 %v1756, %v1796
    %v1816 = vadd.f32 %v1759, %v1796
    %v1817 = vadd.f32 %v1761, %v1796
    %v1818 = vadd.f32 %v1764, %v1796
    %v1819 = vadd.f32 %v1766, %v1796
    %v1820 = vadd.f32 %v1769, %v1796
    %v1821 = vadd.f32 %v1771, %v1796
    %v1822 = vadd.f32 %v1774, %v1796
    %v1823 = vadd.f32 %v1776, %v1796
    %v1824 = vadd.f32 %v1779, %v1796
    %v1825 = vadd.f32 %v1781, %v1796
    %v1826 = vadd.f32 %v1784, %v1796
    %v1827 = vadd.f32 %v1786, %v1796
    %v1828 = vadd.f32 %v1789, %v1796
    %v1829 = vadd.f32 %v1791, %v1796
    %vm1830 = vcmp.gt.f32.partialorder %v1798, 0.0
    %vm1831 = vcmp.gt.f32.partialorder %v1799, 0.0
    %vm1832 = vcmp.gt.f32.partialorder %v1800, 0.0
    %vm1833 = vcmp.gt.f32.partialorder %v1801, 0.0
    %vm1834 = vcmp.gt.f32.partialorder %v1802, 0.0
    %vm1835 = vcmp.gt.f32.partialorder %v1803, 0.0
    %vm1836 = vcmp.gt.f32.partialorder %v1804, 0.0
    %vm1837 = vcmp.gt.f32.partialorder %v1805, 0.0
    %vm1838 = vcmp.gt.f32.partialorder %v1806, 0.0
    %vm1839 = vcmp.gt.f32.partialorder %v1807, 0.0
    %vm1840 = vcmp.gt.f32.partialorder %v1808, 0.0
    %vm1841 = vcmp.gt.f32.partialorder %v1809, 0.0
    %vm1842 = vcmp.gt.f32.partialorder %v1810, 0.0
    %vm1843 = vcmp.gt.f32.partialorder %v1811, 0.0
    %vm1844 = vcmp.gt.f32.partialorder %v1812, 0.0
    %vm1845 = vcmp.gt.f32.partialorder %v1813, 0.0
    %vm1846 = vcmp.gt.f32.partialorder %v1814, 0.0
    %vm1847 = vcmp.gt.f32.partialorder %v1815, 0.0
    %vm1848 = vcmp.gt.f32.partialorder %v1816, 0.0
    %vm1849 = vcmp.gt.f32.partialorder %v1817, 0.0
    %vm1850 = vcmp.gt.f32.partialorder %v1818, 0.0
    %vm1851 = vcmp.gt.f32.partialorder %v1819, 0.0
    %vm1852 = vcmp.gt.f32.partialorder %v1820, 0.0
    %vm1853 = vcmp.gt.f32.partialorder %v1821, 0.0
    %vm1854 = vcmp.gt.f32.partialorder %v1822, 0.0
    %vm1855 = vcmp.gt.f32.partialorder %v1823, 0.0
    %vm1856 = vcmp.gt.f32.partialorder %v1824, 0.0
    %vm1857 = vcmp.gt.f32.partialorder %v1825, 0.0
    %vm1858 = vcmp.gt.f32.partialorder %v1826, 0.0
    %vm1859 = vcmp.gt.f32.partialorder %v1827, 0.0
    %vm1860 = vcmp.gt.f32.partialorder %v1828, 0.0
    %vm1861 = vcmp.gt.f32.partialorder %v1829, 0.0
    %v1862 = vmul.f32 %v1798, 0.01
    %v1863 = vmul.f32 %v1799, 0.01
    %v1864 = vmul.f32 %v1800, 0.01
    %v1865 = vmul.f32 %v1801, 0.01
    %v1866 = vmul.f32 %v1802, 0.01
    %v1867 = vmul.f32 %v1803, 0.01
    %v1868 = vmul.f32 %v1804, 0.01
    %v1869 = vmul.f32 %v1805, 0.01
    %v1870 = vmul.f32 %v1806, 0.01
    %v1871 = vmul.f32 %v1807, 0.01
    %v1872 = vmul.f32 %v1808, 0.01
    %v1873 = vmul.f32 %v1809, 0.01
    %v1874 = vmul.f32 %v1810, 0.01
    %v1875 = vmul.f32 %v1811, 0.01
    %v1876 = vmul.f32 %v1812, 0.01
    %v1877 = vmul.f32 %v1813, 0.01
    %v1878 = vmul.f32 %v1814, 0.01
    %v1879 = vmul.f32 %v1815, 0.01
    %v1880 = vmul.f32 %v1816, 0.01
    %v1881 = vmul.f32 %v1817, 0.01
    %v1882 = vmul.f32 %v1818, 0.01
    %v1883 = vmul.f32 %v1819, 0.01
    %v1884 = vmul.f32 %v1820, 0.01
    %v1885 = vmul.f32 %v1821, 0.01
    %v1886 = vmul.f32 %v1822, 0.01
    %v1887 = vmul.f32 %v1823, 0.01
    %v1888 = vmul.f32 %v1824, 0.01
    %v1889 = vmul.f32 %v1825, 0.01
    %v1890 = vmul.f32 %v1826, 0.01
    %v1891 = vmul.f32 %v1827, 0.01
    %v1892 = vmul.f32 %v1828, 0.01
    %v1893 = vmul.f32 %v1829, 0.01
    %v1894 = vsel %vm1830, %v1798, %v1862
    %v1895 = vsel %vm1831, %v1799, %v1863
    %v1896 = vsel %vm1832, %v1800, %v1864
    %v1897 = vsel %vm1833, %v1801, %v1865
    %v1898 = vsel %vm1834, %v1802, %v1866
    %v1899 = vsel %vm1835, %v1803, %v1867
    %v1900 = vsel %vm1836, %v1804, %v1868
    %v1901 = vsel %vm1837, %v1805, %v1869
    %v1902 = vsel %vm1838, %v1806, %v1870
    %v1903 = vsel %vm1839, %v1807, %v1871
    %v1904 = vsel %vm1840, %v1808, %v1872
    %v1905 = vsel %vm1841, %v1809, %v1873
    %v1906 = vsel %vm1842, %v1810, %v1874
    %v1907 = vsel %vm1843, %v1811, %v1875
    %v1908 = vsel %vm1844, %v1812, %v1876
    %v1909 = vsel %vm1845, %v1813, %v1877
    %v1910 = vsel %vm1846, %v1814, %v1878
    %v1911 = vsel %vm1847, %v1815, %v1879
    %v1912 = vsel %vm1848, %v1816, %v1880
    %v1913 = vsel %vm1849, %v1817, %v1881
    %v1914 = vsel %vm1850, %v1818, %v1882
    %v1915 = vsel %vm1851, %v1819, %v1883
    %v1916 = vsel %vm1852, %v1820, %v1884
    %v1917 = vsel %vm1853, %v1821, %v1885
    %v1918 = vsel %vm1854, %v1822, %v1886
    %v1919 = vsel %vm1855, %v1823, %v1887
    %v1920 = vsel %vm1856, %v1824, %v1888
    %v1921 = vsel %vm1857, %v1825, %v1889
    %v1922 = vsel %vm1858, %v1826, %v1890
    %v1923 = vsel %vm1859, %v1827, %v1891
    %v1924 = vsel %vm1860, %v1828, %v1892
    %v1925 = vsel %vm1861, %v1829, %v1893
    %v1926 = vmul.f32 %v1894, %v1086
    %v1927 = vmul.f32 %v1895, %v1091
    %v1928 = vmul.f32 %v1896, %v1096
    %v1929 = vmul.f32 %v1897, %v1101
    %v1930 = vmul.f32 %v1898, %v1106
    %v1931 = vmul.f32 %v1899, %v1111
    %v1932 = vmul.f32 %v1900, %v1116
    %v1933 = vmul.f32 %v1901, %v1121
    %v1934 = vmul.f32 %v1902, %v1126
    %v1935 = vmul.f32 %v1903, %v1131
    %v1936 = vmul.f32 %v1904, %v1136
    %v1937 = vmul.f32 %v1905, %v1141
    %v1938 = vmul.f32 %v1906, %v1146
    %v1939 = vmul.f32 %v1907, %v1151
    %v1940 = vmul.f32 %v1908, %v1156
    %v1941 = vmul.f32 %v1909, %v1161
    %v1942 = vmul.f32 %v1910, %v1166
    %v1943 = vmul.f32 %v1911, %v1171
    %v1944 = vmul.f32 %v1912, %v1176
    %v1945 = vmul.f32 %v1913, %v1181
    %v1946 = vmul.f32 %v1914, %v1186
    %v1947 = vmul.f32 %v1915, %v1191
    %v1948 = vmul.f32 %v1916, %v1196
    %v1949 = vmul.f32 %v1917, %v1201
    %v1950 = vmul.f32 %v1918, %v1206
    %v1951 = vmul.f32 %v1919, %v1211
    %v1952 = vmul.f32 %v1920, %v1216
    %v1953 = vmul.f32 %v1921, %v1221
    %v1954 = vmul.f32 %v1922, %v1226
    %v1955 = vmul.f32 %v1923, %v1231
    %v1956 = vmul.f32 %v1924, %v1236
    %v1957 = vmul.f32 %v1925, %v1241
    %v1958 = vpack.c.bf16 %v1927, %v1926
    %v1959 = vpack.c.bf16 %v1929, %v1928
    %v1960 = vpack.c.bf16 %v1931, %v1930
    %v1961 = vpack.c.bf16 %v1933, %v1932
    %v1962 = vpack.c.bf16 %v1935, %v1934
    %v1963 = vpack.c.bf16 %v1937, %v1936
    %v1964 = vpack.c.bf16 %v1939, %v1938
    %v1965 = vpack.c.bf16 %v1941, %v1940
    %v1966 = vpack.c.bf16 %v1943, %v1942
    %v1967 = vpack.c.bf16 %v1945, %v1944
    %v1968 = vpack.c.bf16 %v1947, %v1946
    %v1969 = vpack.c.bf16 %v1949, %v1948
    %v1970 = vpack.c.bf16 %v1951, %v1950
    %v1971 = vpack.c.bf16 %v1953, %v1952
    %v1972 = vpack.c.bf16 %v1955, %v1954
    %v1973 = vpack.c.bf16 %v1957, %v1956
    %1974 = vmatpush.bf16.msra.mxu0 %v1965
    %1975 = vmatpush.bf16.msra.mxu0 %v1964
    %1976 = vmatpush.bf16.msra.mxu0 %v1963
    %1977 = vmatpush.bf16.msra.mxu0 %v1962
    %1978 = vmatpush.bf16.msra.mxu0 %v1961
    %1979 = vmatpush.bf16.msra.mxu0 %v1960
    %1980 = vmatpush.bf16.msra.mxu0 %v1959
    %1981 = vmatpush.bf16.msra.mxu0 %v1958
    %1982 = vmatmul.bf16.gmra.mxu0 %v291
    %v1983 = vpop.f32.mrf.mxu0
    %v1984 = vadd.f32 0.0, %v1983
    %v1985 = vpop.f32.mrf.mxu0
    %v1986 = vadd.f32 0.0, %v1985
    %1987 = vmatmul.bf16.gmra.mxu0 %v293
    %v1988 = vpop.f32.mrf.mxu0
    %v1989 = vadd.f32 0.0, %v1988
    %v1990 = vpop.f32.mrf.mxu0
    %v1991 = vadd.f32 0.0, %v1990
    %1992 = vmatmul.bf16.gmra.mxu0 %v295
    %v1993 = vpop.f32.mrf.mxu0
    %v1994 = vadd.f32 0.0, %v1993
    %v1995 = vpop.f32.mrf.mxu0
    %v1996 = vadd.f32 0.0, %v1995
    %1997 = vmatmul.bf16.gmra.mxu0 %v297
    %v1998 = vpop.f32.mrf.mxu0
    %v1999 = vadd.f32 0.0, %v1998
    %v2000 = vpop.f32.mrf.mxu0
    %v2001 = vadd.f32 0.0, %v2000
    %2002 = vmatmul.bf16.gmra.mxu0 %v299
    %v2003 = vpop.f32.mrf.mxu0
    %v2004 = vadd.f32 0.0, %v2003
    %v2005 = vpop.f32.mrf.mxu0
    %v2006 = vadd.f32 0.0, %v2005
    %2007 = vmatmul.bf16.gmra.mxu0 %v301
    %v2008 = vpop.f32.mrf.mxu0
    %v2009 = vadd.f32 0.0, %v2008
    %v2010 = vpop.f32.mrf.mxu0
    %v2011 = vadd.f32 0.0, %v2010
    %2012 = vmatmul.bf16.gmra.mxu0 %v303
    %v2013 = vpop.f32.mrf.mxu0
    %v2014 = vadd.f32 0.0, %v2013
    %v2015 = vpop.f32.mrf.mxu0
    %v2016 = vadd.f32 0.0, %v2015
    %2017 = vmatmul.bf16.gmra.mxu0 %v305
    %v2018 = vpop.f32.mrf.mxu0
    %v2019 = vadd.f32 0.0, %v2018
    %v2020 = vpop.f32.mrf.mxu0
    %v2021 = vadd.f32 0.0, %v2020
    %2022 = vmatmul.bf16.gmra.mxu0 %v307
    %v2023 = vpop.f32.mrf.mxu0
    %v2024 = vadd.f32 0.0, %v2023
    %v2025 = vpop.f32.mrf.mxu0
    %v2026 = vadd.f32 0.0, %v2025
    %2027 = vmatmul.bf16.gmra.mxu0 %v309
    %v2028 = vpop.f32.mrf.mxu0
    %v2029 = vadd.f32 0.0, %v2028
    %v2030 = vpop.f32.mrf.mxu0
    %v2031 = vadd.f32 0.0, %v2030
    %2032 = vmatmul.bf16.gmra.mxu0 %v311
    %v2033 = vpop.f32.mrf.mxu0
    %v2034 = vadd.f32 0.0, %v2033
    %v2035 = vpop.f32.mrf.mxu0
    %v2036 = vadd.f32 0.0, %v2035
    %2037 = vmatmul.bf16.gmra.mxu0 %v313
    %v2038 = vpop.f32.mrf.mxu0
    %v2039 = vadd.f32 0.0, %v2038
    %v2040 = vpop.f32.mrf.mxu0
    %v2041 = vadd.f32 0.0, %v2040
    %2042 = vmatmul.bf16.gmra.mxu0 %v315
    %v2043 = vpop.f32.mrf.mxu0
    %v2044 = vadd.f32 0.0, %v2043
    %v2045 = vpop.f32.mrf.mxu0
    %v2046 = vadd.f32 0.0, %v2045
    %2047 = vmatmul.bf16.gmra.mxu0 %v317
    %v2048 = vpop.f32.mrf.mxu0
    %v2049 = vadd.f32 0.0, %v2048
    %v2050 = vpop.f32.mrf.mxu0
    %v2051 = vadd.f32 0.0, %v2050
    %2052 = vmatmul.bf16.gmra.mxu0 %v319
    %v2053 = vpop.f32.mrf.mxu0
    %v2054 = vadd.f32 0.0, %v2053
    %v2055 = vpop.f32.mrf.mxu0
    %v2056 = vadd.f32 0.0, %v2055
    %2057 = vmatmul.bf16.gmra.mxu0 %v321
    %v2058 = vpop.f32.mrf.mxu0
    %v2059 = vadd.f32 0.0, %v2058
    %v2060 = vpop.f32.mrf.mxu0
    %v2061 = vadd.f32 0.0, %v2060
    %2062 = vdwg.mxu0
    %2063 = vmatpush.bf16.msra.mxu0 %v1973
    %2064 = vmatpush.bf16.msra.mxu0 %v1972
    %2065 = vmatpush.bf16.msra.mxu0 %v1971
    %2066 = vmatpush.bf16.msra.mxu0 %v1970
    %2067 = vmatpush.bf16.msra.mxu0 %v1969
    %2068 = vmatpush.bf16.msra.mxu0 %v1968
    %2069 = vmatpush.bf16.msra.mxu0 %v1967
    %2070 = vmatpush.bf16.msra.mxu0 %v1966
    %2071 = vmatmul.bf16.gmra.mxu0 %v292
    %v2072 = vpop.f32.mrf.mxu0
    %v2073 = vadd.f32 %v1984, %v2072
    %v2074 = vpop.f32.mrf.mxu0
    %v2075 = vadd.f32 %v1986, %v2074
    %2076 = vmatmul.bf16.gmra.mxu0 %v294
    %v2077 = vpop.f32.mrf.mxu0
    %v2078 = vadd.f32 %v1989, %v2077
    %v2079 = vpop.f32.mrf.mxu0
    %v2080 = vadd.f32 %v1991, %v2079
    %2081 = vmatmul.bf16.gmra.mxu0 %v296
    %v2082 = vpop.f32.mrf.mxu0
    %v2083 = vadd.f32 %v1994, %v2082
    %v2084 = vpop.f32.mrf.mxu0
    %v2085 = vadd.f32 %v1996, %v2084
    %2086 = vmatmul.bf16.gmra.mxu0 %v298
    %v2087 = vpop.f32.mrf.mxu0
    %v2088 = vadd.f32 %v1999, %v2087
    %v2089 = vpop.f32.mrf.mxu0
    %v2090 = vadd.f32 %v2001, %v2089
    %2091 = vmatmul.bf16.gmra.mxu0 %v300
    %v2092 = vpop.f32.mrf.mxu0
    %v2093 = vadd.f32 %v2004, %v2092
    %v2094 = vpop.f32.mrf.mxu0
    %v2095 = vadd.f32 %v2006, %v2094
    %2096 = vmatmul.bf16.gmra.mxu0 %v302
    %v2097 = vpop.f32.mrf.mxu0
    %v2098 = vadd.f32 %v2009, %v2097
    %v2099 = vpop.f32.mrf.mxu0
    %v2100 = vadd.f32 %v2011, %v2099
    %2101 = vmatmul.bf16.gmra.mxu0 %v304
    %v2102 = vpop.f32.mrf.mxu0
    %v2103 = vadd.f32 %v2014, %v2102
    %v2104 = vpop.f32.mrf.mxu0
    %v2105 = vadd.f32 %v2016, %v2104
    %2106 = vmatmul.bf16.gmra.mxu0 %v306
    %v2107 = vpop.f32.mrf.mxu0
    %v2108 = vadd.f32 %v2019, %v2107
    %v2109 = vpop.f32.mrf.mxu0
    %v2110 = vadd.f32 %v2021, %v2109
    %2111 = vmatmul.bf16.gmra.mxu0 %v308
    %v2112 = vpop.f32.mrf.mxu0
    %v2113 = vadd.f32 %v2024, %v2112
    %v2114 = vpop.f32.mrf.mxu0
    %v2115 = vadd.f32 %v2026, %v2114
    %2116 = vmatmul.bf16.gmra.mxu0 %v310
    %v2117 = vpop.f32.mrf.mxu0
    %v2118 = vadd.f32 %v2029, %v2117
    %v2119 = vpop.f32.mrf.mxu0
    %v2120 = vadd.f32 %v2031, %v2119
    %2121 = vmatmul.bf16.gmra.mxu0 %v312
    %v2122 = vpop.f32.mrf.mxu0
    %v2123 = vadd.f32 %v2034, %v2122
    %v2124 = vpop.f32.mrf.mxu0
    %v2125 = vadd.f32 %v2036, %v2124
    %2126 = vmatmul.bf16.gmra.mxu0 %v314
    %v2127 = vpop.f32.mrf.mxu0
    %v2128 = vadd.f32 %v2039, %v2127
    %v2129 = vpop.f32.mrf.mxu0
    %v2130 = vadd.f32 %v2041, %v2129
    %2131 = vmatmul.bf16.gmra.mxu0 %v316
    %v2132 = vpop.f32.mrf.mxu0
    %v2133 = vadd.f32 %v2044, %v2132
    %v2134 = vpop.f32.mrf.mxu0
    %v2135 = vadd.f32 %v2046, %v2134
    %2136 = vmatmul.bf16.gmra.mxu0 %v318
    %v2137 = vpop.f32.mrf.mxu0
    %v2138 = vadd.f32 %v2049, %v2137
    %v2139 = vpop.f32.mrf.mxu0
    %v2140 = vadd.f32 %v2051, %v2139
    %2141 = vmatmul.bf16.gmra.mxu0 %v320
    %v2142 = vpop.f32.mrf.mxu0
    %v2143 = vadd.f32 %v2054, %v2142
    %v2144 = vpop.f32.mrf.mxu0
    %v2145 = vadd.f32 %v2056, %v2144
    %2146 = vmatmul.bf16.gmra.mxu0 %v322
    %v2147 = vpop.f32.mrf.mxu0
    %v2148 = vadd.f32 %v2059, %v2147
    %v2149 = vpop.f32.mrf.mxu0
    %v2150 = vadd.f32 %v2061, %v2149
    %2151 = vdwg.mxu0
    %v2152 = vpack.c.bf16 %v2075, %v2073
    %v2153 = vpack.c.bf16 %v2080, %v2078
    %v2154 = vpack.c.bf16 %v2085, %v2083
    %v2155 = vpack.c.bf16 %v2090, %v2088
    %v2156 = vpack.c.bf16 %v2095, %v2093
    %v2157 = vpack.c.bf16 %v2100, %v2098
    %v2158 = vpack.c.bf16 %v2105, %v2103
    %v2159 = vpack.c.bf16 %v2110, %v2108
    %v2160 = vpack.c.bf16 %v2115, %v2113
    %v2161 = vpack.c.bf16 %v2120, %v2118
    %v2162 = vpack.c.bf16 %v2125, %v2123
    %v2163 = vpack.c.bf16 %v2130, %v2128
    %v2164 = vpack.c.bf16 %v2135, %v2133
    %v2165 = vpack.c.bf16 %v2140, %v2138
    %v2166 = vpack.c.bf16 %v2145, %v2143
    %v2167 = vpack.c.bf16 %v2150, %v2148
    %s2168 = scalar_lea.vmem [#allocation5], 128
    %v2169 = vld [vmem:[%s2168] sm:$0xf]
    %v2170 = vld [vmem:[%s2168 + $0x4] sm:$0xf]
    %v2171 = vld [vmem:[%s2168 + $0x8] sm:$0xf]
    %v2172 = vld [vmem:[%s2168 + $0xc] sm:$0xf]
    %v2173 = vld [vmem:[%s2168 + $0x10] sm:$0xf]
    %v2174 = vld [vmem:[%s2168 + $0x14] sm:$0xf]
    %v2175 = vld [vmem:[%s2168 + $0x18] sm:$0xf]
    %v2176 = vld [vmem:[%s2168 + $0x1c] sm:$0xf]
    %v2177 = vld [vmem:[%s2168 + $0x20] sm:$0xf]
    %v2178 = vld [vmem:[%s2168 + $0x24] sm:$0xf]
    %v2179 = vld [vmem:[%s2168 + $0x28] sm:$0xf]
    %v2180 = vld [vmem:[%s2168 + $0x2c] sm:$0xf]
    %v2181 = vld [vmem:[%s2168 + $0x30] sm:$0xf]
    %v2182 = vld [vmem:[%s2168 + $0x34] sm:$0xf]
    %v2183 = vld [vmem:[%s2168 + $0x38] sm:$0xf]
    %v2184 = vld [vmem:[%s2168 + $0x3c] sm:$0xf]
    %s2185 = scalar_lea.vmem [#allocation7], 128
    %v2186 = vld [vmem:[%s2185] sm:$0xf]
    %v2187 = vld [vmem:[%s2185 + $0x4] sm:$0xf]
    %v2188 = vld [vmem:[%s2185 + $0x8] sm:$0xf]
    %v2189 = vld [vmem:[%s2185 + $0xc] sm:$0xf]
    %v2190 = vld [vmem:[%s2185 + $0x10] sm:$0xf]
    %v2191 = vld [vmem:[%s2185 + $0x14] sm:$0xf]
    %v2192 = vld [vmem:[%s2185 + $0x18] sm:$0xf]
    %v2193 = vld [vmem:[%s2185 + $0x1c] sm:$0xf]
    %v2194 = vld [vmem:[%s2185 + $0x20] sm:$0xf]
    %v2195 = vld [vmem:[%s2185 + $0x24] sm:$0xf]
    %v2196 = vld [vmem:[%s2185 + $0x28] sm:$0xf]
    %v2197 = vld [vmem:[%s2185 + $0x2c] sm:$0xf]
    %v2198 = vld [vmem:[%s2185 + $0x30] sm:$0xf]
    %v2199 = vld [vmem:[%s2185 + $0x34] sm:$0xf]
    %v2200 = vld [vmem:[%s2185 + $0x38] sm:$0xf]
    %v2201 = vld [vmem:[%s2185 + $0x3c] sm:$0xf]
    %v2218 = vunpack.c.l.b16 %v2186
    %v2219 = vunpack.c.l.b16 %v2187
    %v2220 = vunpack.c.l.b16 %v2188
    %v2221 = vunpack.c.l.b16 %v2189
    %v2222 = vunpack.c.l.b16 %v2190
    %v2223 = vunpack.c.l.b16 %v2191
    %v2224 = vunpack.c.l.b16 %v2192
    %v2225 = vunpack.c.l.b16 %v2193
    %v2226 = vunpack.c.l.b16 %v2194
    %v2227 = vunpack.c.l.b16 %v2195
    %v2228 = vunpack.c.l.b16 %v2196
    %v2229 = vunpack.c.l.b16 %v2197
    %v2230 = vunpack.c.l.b16 %v2198
    %v2231 = vunpack.c.l.b16 %v2199
    %v2232 = vunpack.c.l.b16 %v2200
    %v2233 = vunpack.c.l.b16 %v2201
    %v2234 = vpack.c.b16 %v2219, %v2218
    %v2235 = vpack.c.b16 %v2221, %v2220
    %v2236 = vpack.c.b16 %v2223, %v2222
    %v2237 = vpack.c.b16 %v2225, %v2224
    %v2238 = vpack.c.b16 %v2227, %v2226
    %v2239 = vpack.c.b16 %v2229, %v2228
    %v2240 = vpack.c.b16 %v2231, %v2230
    %v2241 = vpack.c.b16 %v2233, %v2232
    %2250 = vmatpush.bf16.msra.mxu0 %v2241
    %2251 = vmatpush.bf16.msra.mxu0 %v2240
    %2252 = vmatpush.bf16.msra.mxu0 %v2239
    %2253 = vmatpush.bf16.msra.mxu0 %v2238
    %2254 = vmatpush.bf16.msra.mxu0 %v2237
    %2255 = vmatpush.bf16.msra.mxu0 %v2236
    %2256 = vmatpush.bf16.msra.mxu0 %v2235
    %2257 = vmatpush.bf16.msra.mxu0 %v2234
    %2258 = vmatmul.bf16.gmra.mxu0 %v1958
    %v2259 = vpop.f32.mrf.mxu0
    %v2260 = vadd.f32 0.0, %v2259
    %v2261 = vpop.f32.mrf.mxu0
    %v2262 = vadd.f32 0.0, %v2261
    %2263 = vmatmul.bf16.gmra.mxu0 %v1959
    %v2264 = vpop.f32.mrf.mxu0
    %v2265 = vadd.f32 0.0, %v2264
    %v2266 = vpop.f32.mrf.mxu0
    %v2267 = vadd.f32 0.0, %v2266
    %2268 = vmatmul.bf16.gmra.mxu0 %v1960
    %v2269 = vpop.f32.mrf.mxu0
    %v2270 = vadd.f32 0.0, %v2269
    %v2271 = vpop.f32.mrf.mxu0
    %v2272 = vadd.f32 0.0, %v2271
    %2273 = vmatmul.bf16.gmra.mxu0 %v1961
    %v2274 = vpop.f32.mrf.mxu0
    %v2275 = vadd.f32 0.0, %v2274
    %v2276 = vpop.f32.mrf.mxu0
    %v2277 = vadd.f32 0.0, %v2276
    %2278 = vmatmul.bf16.gmra.mxu0 %v1962
    %v2279 = vpop.f32.mrf.mxu0
    %v2280 = vadd.f32 0.0, %v2279
    %v2281 = vpop.f32.mrf.mxu0
    %v2282 = vadd.f32 0.0, %v2281
    %2283 = vmatmul.bf16.gmra.mxu0 %v1963
    %v2284 = vpop.f32.mrf.mxu0
    %v2285 = vadd.f32 0.0, %v2284
    %v2286 = vpop.f32.mrf.mxu0
    %v2287 = vadd.f32 0.0, %v2286
    %2288 = vmatmul.bf16.gmra.mxu0 %v1964
    %v2289 = vpop.f32.mrf.mxu0
    %v2290 = vadd.f32 0.0, %v2289
    %v2291 = vpop.f32.mrf.mxu0
    %v2292 = vadd.f32 0.0, %v2291
    %2293 = vmatmul.bf16.gmra.mxu0 %v1965
    %v2294 = vpop.f32.mrf.mxu0
    %v2295 = vadd.f32 0.0, %v2294
    %v2296 = vpop.f32.mrf.mxu0
    %v2297 = vadd.f32 0.0, %v2296
    %2298 = vmatmul.bf16.gmra.mxu0 %v1966
    %v2299 = vpop.f32.mrf.mxu0
    %v2300 = vadd.f32 0.0, %v2299
    %v2301 = vpop.f32.mrf.mxu0
    %v2302 = vadd.f32 0.0, %v2301
    %2303 = vmatmul.bf16.gmra.mxu0 %v1967
    %v2304 = vpop.f32.mrf.mxu0
    %v2305 = vadd.f32 0.0, %v2304
    %v2306 = vpop.f32.mrf.mxu0
    %v2307 = vadd.f32 0.0, %v2306
    %2308 = vmatmul.bf16.gmra.mxu0 %v1968
    %v2309 = vpop.f32.mrf.mxu0
    %v2310 = vadd.f32 0.0, %v2309
    %v2311 = vpop.f32.mrf.mxu0
    %v2312 = vadd.f32 0.0, %v2311
    %2313 = vmatmul.bf16.gmra.mxu0 %v1969
    %v2314 = vpop.f32.mrf.mxu0
    %v2315 = vadd.f32 0.0, %v2314
    %v2316 = vpop.f32.mrf.mxu0
    %v2317 = vadd.f32 0.0, %v2316
    %2318 = vmatmul.bf16.gmra.mxu0 %v1970
    %v2319 = vpop.f32.mrf.mxu0
    %v2320 = vadd.f32 0.0, %v2319
    %v2321 = vpop.f32.mrf.mxu0
    %v2322 = vadd.f32 0.0, %v2321
    %2323 = vmatmul.bf16.gmra.mxu0 %v1971
    %v2324 = vpop.f32.mrf.mxu0
    %v2325 = vadd.f32 0.0, %v2324
    %v2326 = vpop.f32.mrf.mxu0
    %v2327 = vadd.f32 0.0, %v2326
    %2328 = vmatmul.bf16.gmra.mxu0 %v1972
    %v2329 = vpop.f32.mrf.mxu0
    %v2330 = vadd.f32 0.0, %v2329
    %v2331 = vpop.f32.mrf.mxu0
    %v2332 = vadd.f32 0.0, %v2331
    %2333 = vmatmul.bf16.gmra.mxu0 %v1973
    %v2334 = vpop.f32.mrf.mxu0
    %v2335 = vadd.f32 0.0, %v2334
    %v2336 = vpop.f32.mrf.mxu0
    %v2337 = vadd.f32 0.0, %v2336
    %2338 = vdwg.mxu0
    %v2355 = vunpack.c.l.b16 %v2169
    %v2356 = vunpack.c.l.b16 %v2170
    %v2357 = vunpack.c.l.b16 %v2171
    %v2358 = vunpack.c.l.b16 %v2172
    %v2359 = vunpack.c.l.b16 %v2173
    %v2360 = vunpack.c.l.b16 %v2174
    %v2361 = vunpack.c.l.b16 %v2175
    %v2362 = vunpack.c.l.b16 %v2176
    %v2363 = vunpack.c.l.b16 %v2177
    %v2364 = vunpack.c.l.b16 %v2178
    %v2365 = vunpack.c.l.b16 %v2179
    %v2366 = vunpack.c.l.b16 %v2180
    %v2367 = vunpack.c.l.b16 %v2181
    %v2368 = vunpack.c.l.b16 %v2182
    %v2369 = vunpack.c.l.b16 %v2183
    %v2370 = vunpack.c.l.b16 %v2184
    %v2371 = vpack.c.b16 %v2356, %v2355
    %v2372 = vpack.c.b16 %v2358, %v2357
    %v2373 = vpack.c.b16 %v2360, %v2359
    %v2374 = vpack.c.b16 %v2362, %v2361
    %v2375 = vpack.c.b16 %v2364, %v2363
    %v2376 = vpack.c.b16 %v2366, %v2365
    %v2377 = vpack.c.b16 %v2368, %v2367
    %v2378 = vpack.c.b16 %v2370, %v2369
    %2387 = vmatpush.bf16.msra.mxu0 %v2378
    %2388 = vmatpush.bf16.msra.mxu0 %v2377
    %2389 = vmatpush.bf16.msra.mxu0 %v2376
    %2390 = vmatpush.bf16.msra.mxu0 %v2375
    %2391 = vmatpush.bf16.msra.mxu0 %v2374
    %2392 = vmatpush.bf16.msra.mxu0 %v2373
    %2393 = vmatpush.bf16.msra.mxu0 %v2372
    %2394 = vmatpush.bf16.msra.mxu0 %v2371
    %2395 = vmatmul.bf16.gmra.mxu0 %v2152
    %v2396 = vpop.f32.mrf.mxu0
    %v2397 = vadd.f32 %v2260, %v2396
    %v2398 = vpop.f32.mrf.mxu0
    %v2399 = vadd.f32 %v2262, %v2398
    %2400 = vmatmul.bf16.gmra.mxu0 %v2153
    %v2401 = vpop.f32.mrf.mxu0
    %v2402 = vadd.f32 %v2265, %v2401
    %v2403 = vpop.f32.mrf.mxu0
    %v2404 = vadd.f32 %v2267, %v2403
    %2405 = vmatmul.bf16.gmra.mxu0 %v2154
    %v2406 = vpop.f32.mrf.mxu0
    %v2407 = vadd.f32 %v2270, %v2406
    %v2408 = vpop.f32.mrf.mxu0
    %v2409 = vadd.f32 %v2272, %v2408
    %2410 = vmatmul.bf16.gmra.mxu0 %v2155
    %v2411 = vpop.f32.mrf.mxu0
    %v2412 = vadd.f32 %v2275, %v2411
    %v2413 = vpop.f32.mrf.mxu0
    %v2414 = vadd.f32 %v2277, %v2413
    %2415 = vmatmul.bf16.gmra.mxu0 %v2156
    %v2416 = vpop.f32.mrf.mxu0
    %v2417 = vadd.f32 %v2280, %v2416
    %v2418 = vpop.f32.mrf.mxu0
    %v2419 = vadd.f32 %v2282, %v2418
    %2420 = vmatmul.bf16.gmra.mxu0 %v2157
    %v2421 = vpop.f32.mrf.mxu0
    %v2422 = vadd.f32 %v2285, %v2421
    %v2423 = vpop.f32.mrf.mxu0
    %v2424 = vadd.f32 %v2287, %v2423
    %2425 = vmatmul.bf16.gmra.mxu0 %v2158
    %v2426 = vpop.f32.mrf.mxu0
    %v2427 = vadd.f32 %v2290, %v2426
    %v2428 = vpop.f32.mrf.mxu0
    %v2429 = vadd.f32 %v2292, %v2428
    %2430 = vmatmul.bf16.gmra.mxu0 %v2159
    %v2431 = vpop.f32.mrf.mxu0
    %v2432 = vadd.f32 %v2295, %v2431
    %v2433 = vpop.f32.mrf.mxu0
    %v2434 = vadd.f32 %v2297, %v2433
    %2435 = vmatmul.bf16.gmra.mxu0 %v2160
    %v2436 = vpop.f32.mrf.mxu0
    %v2437 = vadd.f32 %v2300, %v2436
    %v2438 = vpop.f32.mrf.mxu0
    %v2439 = vadd.f32 %v2302, %v2438
    %2440 = vmatmul.bf16.gmra.mxu0 %v2161
    %v2441 = vpop.f32.mrf.mxu0
    %v2442 = vadd.f32 %v2305, %v2441
    %v2443 = vpop.f32.mrf.mxu0
    %v2444 = vadd.f32 %v2307, %v2443
    %2445 = vmatmul.bf16.gmra.mxu0 %v2162
    %v2446 = vpop.f32.mrf.mxu0
    %v2447 = vadd.f32 %v2310, %v2446
    %v2448 = vpop.f32.mrf.mxu0
    %v2449 = vadd.f32 %v2312, %v2448
    %2450 = vmatmul.bf16.gmra.mxu0 %v2163
    %v2451 = vpop.f32.mrf.mxu0
    %v2452 = vadd.f32 %v2315, %v2451
    %v2453 = vpop.f32.mrf.mxu0
    %v2454 = vadd.f32 %v2317, %v2453
    %2455 = vmatmul.bf16.gmra.mxu0 %v2164
    %v2456 = vpop.f32.mrf.mxu0
    %v2457 = vadd.f32 %v2320, %v2456
    %v2458 = vpop.f32.mrf.mxu0
    %v2459 = vadd.f32 %v2322, %v2458
    %2460 = vmatmul.bf16.gmra.mxu0 %v2165
    %v2461 = vpop.f32.mrf.mxu0
    %v2462 = vadd.f32 %v2325, %v2461
    %v2463 = vpop.f32.mrf.mxu0
    %v2464 = vadd.f32 %v2327, %v2463
    %2465 = vmatmul.bf16.gmra.mxu0 %v2166
    %v2466 = vpop.f32.mrf.mxu0
    %v2467 = vadd.f32 %v2330, %v2466
    %v2468 = vpop.f32.mrf.mxu0
    %v2469 = vadd.f32 %v2332, %v2468
    %2470 = vmatmul.bf16.gmra.mxu0 %v2167
    %v2471 = vpop.f32.mrf.mxu0
    %v2472 = vadd.f32 %v2335, %v2471
    %v2473 = vpop.f32.mrf.mxu0
    %v2474 = vadd.f32 %v2337, %v2473
    %2475 = vdwg.mxu0
    %s2476 = scalar_lea.vmem %s7, 2
    %v2477 = vld [vmem:[%s2476] sm:$0x1]
    %v2479 = vperm.slane %v2477, 0
    %v2481 = vadd.f32 %v2397, %v2479
    %v2482 = vadd.f32 %v2399, %v2479
    %v2483 = vadd.f32 %v2402, %v2479
    %v2484 = vadd.f32 %v2404, %v2479
    %v2485 = vadd.f32 %v2407, %v2479
    %v2486 = vadd.f32 %v2409, %v2479
    %v2487 = vadd.f32 %v2412, %v2479
    %v2488 = vadd.f32 %v2414, %v2479
    %v2489 = vadd.f32 %v2417, %v2479
    %v2490 = vadd.f32 %v2419, %v2479
    %v2491 = vadd.f32 %v2422, %v2479
    %v2492 = vadd.f32 %v2424, %v2479
    %v2493 = vadd.f32 %v2427, %v2479
    %v2494 = vadd.f32 %v2429, %v2479
    %v2495 = vadd.f32 %v2432, %v2479
    %v2496 = vadd.f32 %v2434, %v2479
    %v2497 = vadd.f32 %v2437, %v2479
    %v2498 = vadd.f32 %v2439, %v2479
    %v2499 = vadd.f32 %v2442, %v2479
    %v2500 = vadd.f32 %v2444, %v2479
    %v2501 = vadd.f32 %v2447, %v2479
    %v2502 = vadd.f32 %v2449, %v2479
    %v2503 = vadd.f32 %v2452, %v2479
    %v2504 = vadd.f32 %v2454, %v2479
    %v2505 = vadd.f32 %v2457, %v2479
    %v2506 = vadd.f32 %v2459, %v2479
    %v2507 = vadd.f32 %v2462, %v2479
    %v2508 = vadd.f32 %v2464, %v2479
    %v2509 = vadd.f32 %v2467, %v2479
    %v2510 = vadd.f32 %v2469, %v2479
    %v2511 = vadd.f32 %v2472, %v2479
    %v2512 = vadd.f32 %v2474, %v2479
    %v2513 = vmul.f32 %v2481, %v1086
    %v2514 = vmul.f32 %v2482, %v1091
    %v2515 = vmul.f32 %v2483, %v1096
    %v2516 = vmul.f32 %v2484, %v1101
    %v2517 = vmul.f32 %v2485, %v1106
    %v2518 = vmul.f32 %v2486, %v1111
    %v2519 = vmul.f32 %v2487, %v1116
    %v2520 = vmul.f32 %v2488, %v1121
    %v2521 = vmul.f32 %v2489, %v1126
    %v2522 = vmul.f32 %v2490, %v1131
    %v2523 = vmul.f32 %v2491, %v1136
    %v2524 = vmul.f32 %v2492, %v1141
    %v2525 = vmul.f32 %v2493, %v1146
    %v2526 = vmul.f32 %v2494, %v1151
    %v2527 = vmul.f32 %v2495, %v1156
    %v2528 = vmul.f32 %v2496, %v1161
    %v2529 = vmul.f32 %v2497, %v1166
    %v2530 = vmul.f32 %v2498, %v1171
    %v2531 = vmul.f32 %v2499, %v1176
    %v2532 = vmul.f32 %v2500, %v1181
    %v2533 = vmul.f32 %v2501, %v1186
    %v2534 = vmul.f32 %v2502, %v1191
    %v2535 = vmul.f32 %v2503, %v1196
    %v2536 = vmul.f32 %v2504, %v1201
    %v2537 = vmul.f32 %v2505, %v1206
    %v2538 = vmul.f32 %v2506, %v1211
    %v2539 = vmul.f32 %v2507, %v1216
    %v2540 = vmul.f32 %v2508, %v1221
    %v2541 = vmul.f32 %v2509, %v1226
    %v2542 = vmul.f32 %v2510, %v1231
    %v2543 = vmul.f32 %v2511, %v1236
    %v2544 = vmul.f32 %v2512, %v1241
    %v2545 = vpack.c.bf16 %v2514, %v2513
    %v2546 = vpack.c.bf16 %v2516, %v2515
    %v2547 = vpack.c.bf16 %v2518, %v2517
    %v2548 = vpack.c.bf16 %v2520, %v2519
    %v2549 = vpack.c.bf16 %v2522, %v2521
    %v2550 = vpack.c.bf16 %v2524, %v2523
    %v2551 = vpack.c.bf16 %v2526, %v2525
    %v2552 = vpack.c.bf16 %v2528, %v2527
    %v2553 = vpack.c.bf16 %v2530, %v2529
    %v2554 = vpack.c.bf16 %v2532, %v2531
    %v2555 = vpack.c.bf16 %v2534, %v2533
    %v2556 = vpack.c.bf16 %v2536, %v2535
    %v2557 = vpack.c.bf16 %v2538, %v2537
    %v2558 = vpack.c.bf16 %v2540, %v2539
    %v2559 = vpack.c.bf16 %v2542, %v2541
    %v2560 = vpack.c.bf16 %v2544, %v2543
    %v2561 = vld [vmem:[%s3] sm:$0xff]
    %v2563 = vunpack.c.l.b16 %v2561
    %v2564 = vunpack.c.h.b16 %v2561
    %v2565 = vpack.c.b16 %v2563, %v2563
    %v2566 = vpack.c.b16 %v2564, %v2564
    %2569 = vmatpush.bf16.msra.mxu0 %v2552
    %2570 = vmatpush.bf16.msra.mxu0 %v2551
    %2571 = vmatpush.bf16.msra.mxu0 %v2550
    %2572 = vmatpush.bf16.msra.mxu0 %v2549
    %2573 = vmatpush.bf16.msra.mxu0 %v2548
    %2574 = vmatpush.bf16.msra.mxu0 %v2547
    %2575 = vmatpush.bf16.msra.mxu0 %v2546
    %2576 = vmatpush.bf16.msra.mxu0 %v2545
    %2577 = vmatmul.bf16.gmra.mxu0 %v2565
    %v2578 = vpop.f32.mrf.mxu0
    %v2579 = vadd.f32 0.0, %v2578
    %v2580 = vpop.f32.mrf.mxu0
    %2581 = vdwg.mxu0
    %2582 = vmatpush.bf16.msra.mxu0 %v2560
    %2583 = vmatpush.bf16.msra.mxu0 %v2559
    %2584 = vmatpush.bf16.msra.mxu0 %v2558
    %2585 = vmatpush.bf16.msra.mxu0 %v2557
    %2586 = vmatpush.bf16.msra.mxu0 %v2556
    %2587 = vmatpush.bf16.msra.mxu0 %v2555
    %2588 = vmatpush.bf16.msra.mxu0 %v2554
    %2589 = vmatpush.bf16.msra.mxu0 %v2553
    %2590 = vmatmul.bf16.gmra.mxu0 %v2566
    %v2591 = vpop.f32.mrf.mxu0
    %v2592 = vadd.f32 %v2579, %v2591
    %v2593 = vpop.f32.mrf.mxu0
    %2594 = vdwg.mxu0
    %v2595 = vld [vmem:[%s4] sm:$0xff]
    %2597 = vset.pattern.permute.xlu0 0
    %2598 = vperm.xlu0 %2597, %v2595
    %v2599 = vpop.permute.xlu0 %2598
    %v2601 = vmul.f32 %v2592, %v2599
    %v2602 = vld [vmem:[#allocation8] sm:$0xff]
    %v2603 = vld [vmem:[#allocation8 + $0x8] sm:$0xff]
    %v2604 = vld [vmem:[#allocation8 + $0x10] sm:$0xff]
    %v2605 = vld [vmem:[#allocation8 + $0x18] sm:$0xff]
    %v2606 = vld [vmem:[#allocation8 + $0x20] sm:$0xff]
    %v2607 = vld [vmem:[#allocation8 + $0x28] sm:$0xff]
    %v2608 = vld [vmem:[#allocation8 + $0x30] sm:$0xff]
    %v2609 = vld [vmem:[#allocation8 + $0x38] sm:$0xff]
    %v2610 = vld [vmem:[#allocation8 + $0x40] sm:$0xff]
    %v2611 = vld [vmem:[#allocation8 + $0x48] sm:$0xff]
    %v2612 = vld [vmem:[#allocation8 + $0x50] sm:$0xff]
    %v2613 = vld [vmem:[#allocation8 + $0x58] sm:$0xff]
    %v2614 = vld [vmem:[#allocation8 + $0x60] sm:$0xff]
    %v2615 = vld [vmem:[#allocation8 + $0x68] sm:$0xff]
    %v2616 = vld [vmem:[#allocation8 + $0x70] sm:$0xff]
    %v2617 = vld [vmem:[#allocation8 + $0x78] sm:$0xff]
    %v2618 = vld [vmem:[%s9] sm:$0x1]
    %v2620 = vperm.slane %v2618, 0
    %2622 = vmatpush.msra.mxu0 %v2617
    %2623 = vmatpush.msra.mxu0 %v2616
    %2624 = vmatpush.msra.mxu0 %v2615
    %2625 = vmatpush.msra.mxu0 %v2614
    %2626 = vmatpush.msra.mxu0 %v2613
    %2627 = vmatpush.msra.mxu0 %v2612
    %2628 = vmatpush.msra.mxu0 %v2611
    %2629 = vmatpush.msra.mxu0 %v2610
    %2630 = vmatpush.msra.mxu0 %v2609
    %2631 = vmatpush.msra.mxu0 %v2608
    %2632 = vmatpush.msra.mxu0 %v2607
    %2633 = vmatpush.msra.mxu0 %v2606
    %2634 = vmatpush.msra.mxu0 %v2605
    %2635 = vmatpush.msra.mxu0 %v2604
    %2636 = vmatpush.msra.mxu0 %v2603
    %2637 = vmatpush.msra.mxu0 %v2602
    %2638 = vmatmul.f32.gmra.mxu0 %v2601
    %v2639 = vpop.f32.mrf.mxu0
    %v2640 = vadd.f32 %v2620, %v2639
    %2641 = vdwg.mxu0
    %2642 = vst [vmem:[#allocation10] sm:$0xff] %v2640
    // Predicated region
    $region58: #{tpu_custom_call.1} parent=1 // pred_check
      _
    $region59: #{tpu_custom_call.1} parent=1 // pred_check_branch
      %2644 = sbr.rel (0) target = $region61
    $region60: #{tpu_custom_call.1} parent=1 // pred_region
      %2646 = vsyncadd [#allocation4], 0
      %s2648 = sshll.u32 [#allocation10], 4
      %s2649 = int_to_ptr.vmem [resolvable:$true] %s2648
      %s2650 = sshll.u32 %s10, 4
      %s2651 = int_to_ptr.hbm [resolvable:$true] %s2650
      %2653 = dma.vmem_to_hbm [thread:$0]  %s2649, 128, %s2651, [#allocation4]
    $region61: #{tpu_custom_call.1} parent=1 // pred_fallthru
      _
    // Predicated region
    $region62: #{tpu_custom_call.1} parent=1 // pred_check
      _
    $region63: #{tpu_custom_call.1} parent=1 // pred_check_branch
      %2655 = sbr.rel (0) target = $region65
    $region64: #{tpu_custom_call.1} parent=1 // pred_region
      %2657 = dma.done [#allocation4], 128
    $region65: #{tpu_custom_call.1} parent=1 // pred_fallthru
      _
    %2658 = vsyncpa [#allocation3], 1
    %2659 = vsyncpa [#allocation6], 1
    %2660 = vsyncpa [#allocation9], 1
    %2661 = vsyncpa [#allocation4], 1

</llo_original>
